<compile_context>
chip_gen: v7x
topology: tpu7x:2x2x1
jax: 0.10.0
libtpu: 0.0.40
codegen_flags: <defaults>
</compile_context>

<pallas_src>
import jax
import jax.numpy as jnp
from jax import lax
from jax.experimental import pallas as pl
from jax.experimental.pallas import tpu as pltpu


# ----------------------------------------------------------------------------
# Small helpers
# ----------------------------------------------------------------------------
def _num_tensorcores():
    """Best-effort TensorCore count of the local chip (v5e/v6e -> 1, v7x -> 2)."""
    try:
        info = pltpu.get_tpu_info()
        for name in ("num_cores", "core_count", "num_tensorcores",
                     "tensorcore_count", "num_cores_per_chip"):
            v = getattr(info, name, None)
            if isinstance(v, int) and v > 0:
                return v
    except Exception:
        pass
    try:
        kind = jax.devices()[0].device_kind.lower()
        if "v7" in kind or "7x" in kind:
            return 2
    except Exception:
        pass
    return 1


def _pick_batch_block(n, num_cores):
    """Batch elements folded into one grid step.

    Single-TC chips: one grid step (nb = n), per-step overhead dominates here.
    Multi-TC chips: smallest step count >= num_cores that divides n, so the
    "parallel" batch axis can shard across cores (largest nb that still gives
    enough steps -- never collapse to nb=1 unless necessary).
    """
    if n <= 1 or num_cores <= 1:
        return max(n, 1)
    for steps in range(num_cores, n + 1):
        if n % steps == 0:
            return n // steps
    return 1


def _round_up(x, m):
    return -(-x // m) * m


def _vmem_estimate_bytes(nb, cin, crh, cout, l_in, l_out):
    """Rough per-step f32 VMEM footprint (input/output double-buffered)."""
    f = 4
    lane_in, lane_out = _round_up(l_in, 128), _round_up(l_out, 128)
    xin = 2 * nb * _round_up(cin, 8) * lane_in * f      # double-buffered input block
    rel = nb * _round_up(cin, 8) * lane_in * f          # ReLU copy
    col = _round_up(9 * cin, 8) * lane_out * f          # im2col (one batch elem live)
    hid = _round_up(crh, 8) * lane_out * f
    yy = _round_up(cout, 8) * lane_out * f
    ob = 2 * nb * _round_up(cout, 8) * lane_out * f     # double-buffered output block
    wts = (_round_up(crh, 8) * _round_up(9 * cin, 128)
           + _round_up(cout, 8) * _round_up(crh, 128)) * f * 2
    return xin + rel + col + hid + yy + ob + wts


# ----------------------------------------------------------------------------
# Kernel
# ----------------------------------------------------------------------------
def _make_residual_kernel(nb, wp, p0, l_out):
    # Tap offsets relative to an output position, in flattened padded coords.
    offsets = [(dh - 1) * wp + (dw - 1) for dh in range(3) for dw in range(3)]

    def kernel(xpf_ref, w3t_ref, w1t_ref, o_ref):
        # xpf_ref: (nb, Cin, Hp*Wp)  zero-padded input, flattened spatial (pre-ReLU)
        # w3t_ref: (Crh, 9*Cin)      3x3 weights, transposed, taps flattened into K
        # w1t_ref: (Cout, Crh)       1x1 weights, transposed
        # o_ref:   (nb, Cout, Lo)    result at padded positions [p0, p0+Lo)
        #                            (wrapper slices out the interior pixels)
        w3t = w3t_ref[...]
        w1t = w1t_ref[...]
        xpf = xpf_ref[...]
        rpf = jnp.maximum(xpf, 0.0)            # ReLU; zero padding stays zero
        for b in range(nb):                    # nb is tiny and static
            # im2col: 9 lane-shifted views stacked on the sublane (channel) axis
            # at Cin-aligned offsets -> (9*Cin, Lo), pixels stay on lanes.
            taps = [rpf[b, :, p0 + d: p0 + d + l_out] for d in offsets]
            cols = jnp.concatenate(taps, axis=0)
            # 3x3 conv == one K=9*Cin matmul with Lo lane-dense output columns.
            h = jnp.dot(w3t, cols, preferred_element_type=jnp.float32)
            h = jnp.maximum(h, 0.0)
            # 1x1 conv over channels.
            y = jnp.dot(w1t, h, preferred_element_type=jnp.float32)   # (Cout, Lo)
            # Residual add in f32, single cast at the store (Cin == Cout).
            x_res = xpf[b, :, p0: p0 + l_out].astype(jnp.float32)
            o_ref[b] = (x_res + y).astype(o_ref.dtype)

    return kernel


# ----------------------------------------------------------------------------
# Public wrapper (PyTorch NCHW layout; no transposes needed)
# ----------------------------------------------------------------------------
def residual_forward(x_nchw, w3, w1, *, batch_block=None):
    """x (N, Cin, H, W), w3 (3,3,Cin,Crh) HWIO, w1 (Crh,Cout) -> (N, Cout, H, W)."""
    n, cin, h, w = x_nchw.shape
    assert w3.shape[:3] == (3, 3, cin), f"w3 shape {w3.shape} mismatches Cin={cin}"
    crh = w3.shape[3]
    assert w1.shape[0] == crh, f"w1 shape {w1.shape} mismatches Crh={crh}"
    cout = w1.shape[1]
    assert cin == cout, "Residual add requires in_channels == num_hiddens"

    hp, wp = h + 2, w + 2
    l_pad = hp * wp                # flattened padded plane
    p0 = wp + 1                    # flattened index of the first interior pixel
    l_out = (h - 1) * wp + w       # span covering all interior pixels

    # Zero-pad the 1-pixel halo ONCE here.  The kernel relies on the halo being
    # exactly zero (ReLU(0) == 0, so pad-then-ReLU == ReLU-then-pad).
    xpf = jnp.pad(x_nchw, ((0, 0), (0, 0), (1, 1), (1, 1))).reshape(n, cin, l_pad)

    # Weight layouts for the transposed (pixels-on-lanes) matmuls.
    # K index = dh*3*Cin + dw*Cin + cin  == tap stacking order in the kernel.
    w3t = jnp.reshape(w3, (9 * cin, crh)).T          # (Crh, 9*Cin)
    w1t = w1.T                                       # (Cout, Crh)

    # Generation-aware batch folding.
    if batch_block is not None:
        nb = max(1, min(int(batch_block), n))
        while n % nb:
            nb -= 1
    else:
        nb = _pick_batch_block(n, _num_tensorcores())

    vmem_bytes = _vmem_estimate_bytes(nb, cin, crh, cout, l_pad, l_out)
    # TODO(synk): for large H*W*Cin add a halo'd row-tiling grid axis so the 9x
    # `cols` intermediate stays within v7x's 64 MiB VMEM (and an H-split axis
    # so v7x still has 2 parallel steps when N == 1).
    compiler_params = pltpu.CompilerParams(
        dimension_semantics=("parallel",),
        vmem_limit_bytes=int(max(32 * 1024 * 1024, 2 * vmem_bytes)),
    )

    kernel = _make_residual_kernel(nb, wp, p0, l_out)
    out_flat = pl.pallas_call(
        kernel,
        out_shape=jax.ShapeDtypeStruct((n, cout, l_out), x_nchw.dtype),
        grid_spec=pltpu.PrefetchScalarGridSpec(
            num_scalar_prefetch=0,
            grid=(n // nb,),
            in_specs=[
                pl.BlockSpec((nb, cin, l_pad), lambda i: (i, 0, 0)),
                pl.BlockSpec((crh, 9 * cin), lambda i: (0, 0)),
                pl.BlockSpec((cout, crh), lambda i: (0, 0)),
            ],
            out_specs=pl.BlockSpec((nb, cout, l_out), lambda i: (i, 0, 0)),
        ),
        compiler_params=compiler_params,
    )(xpf, w3t, w1t)

    # out_flat[:, :, q] is the result at padded position p0 + q; interior pixel
    # (hh, ww) sits at q = hh*Wp + ww.  Pad to H*Wp, fold rows, drop the two
    # padding columns (reshape is metadata-only; the slice is a tiny HBM copy).
    out = jnp.pad(out_flat, ((0, 0), (0, 0), (0, h * wp - l_out)))
    out = out.reshape(n, cout, h, wp)[:, :, :, :w]
    return out


# ----------------------------------------------------------------------------
# Pure-JAX reference (matches the PyTorch module semantics)
# ----------------------------------------------------------------------------
def residual_reference(x_nchw, w3, w1):
    r = jax.nn.relu(x_nchw)
    y = lax.conv_general_dilated(
        r, w3, window_strides=(1, 1), padding="SAME",
        dimension_numbers=("NCHW", "HWIO", "NCHW"))
    y = jax.nn.relu(y)
    y = lax.conv_general_dilated(
        y, w1[None, None], window_strides=(1, 1), padding="VALID",
        dimension_numbers=("NCHW", "HWIO", "NCHW"))
    return x_nchw + y


if __name__ == "__main__":
    # Residual(in_channels=32, num_hiddens=32, num_residual_hiddens=16)
    N, Cin, H, W = 2, 32, 16, 16
    num_hiddens, num_residual_hiddens = 32, 16

    key = jax.random.PRNGKey(0)
    kx, k3, k1 = jax.random.split(key, 3)

    x = jax.random.normal(kx, (N, Cin, H, W), dtype=jnp.float32)
    w3 = (jax.random.normal(k3, (3, 3, Cin, num_residual_hiddens),
                            dtype=jnp.float32) * 0.05)
    w1 = (jax.random.normal(k1, (num_residual_hiddens, num_hiddens),
                            dtype=jnp.float32) * 0.05)

    out = jax.block_until_ready(residual_forward(x, w3, w1))

    ref = residual_reference(x, w3, w1)
    assert out.shape == (N, num_hiddens, H, W)
    assert jnp.allclose(out, ref, atol=1e-4, rtol=1e-4), "mismatch vs reference"

    print("KERNEL_OK")
</pallas_src>

<mosaic_0001>
module attributes {stable_mosaic.version = 11 : i64} {
  func.func @kernel(%arg0: i32, %arg1: memref<2x32x324xf32, #tpu.memory_space<vmem>>, %arg2: memref<16x288xf32, #tpu.memory_space<vmem>>, %arg3: memref<32x16xf32, #tpu.memory_space<vmem>>, %arg4: memref<2x32x286xf32, #tpu.memory_space<vmem>>) attributes {dimension_semantics = [#tpu.dimension_semantics<parallel>], iteration_bounds = array<i64: 1>, scalar_prefetch = 0 : i64, scratch_operands = 0 : i64, tpu.core_type = #tpu.core_type<tc>, window_params = [{transform_indices = @transform_0, window_bounds = array<i64: 2, 32, 324>}, {pipeline_mode = #tpu.pipeline_mode<synchronous>, transform_indices = @transform_1, window_bounds = array<i64: 16, 288>}, {pipeline_mode = #tpu.pipeline_mode<synchronous>, transform_indices = @transform_2, window_bounds = array<i64: 32, 16>}, {transform_indices = @transform_3, window_bounds = array<i64: 2, 32, 286>}]} {
    %c0 = arith.constant 0 : index
    %c0_0 = arith.constant 0 : index
    %0 = vector.load %arg2[%c0, %c0_0] : memref<16x288xf32, #tpu.memory_space<vmem>>, vector<16x288xf32>
    %c0_1 = arith.constant 0 : index
    %c0_2 = arith.constant 0 : index
    %1 = vector.load %arg3[%c0_1, %c0_2] : memref<32x16xf32, #tpu.memory_space<vmem>>, vector<32x16xf32>
    %c0_3 = arith.constant 0 : index
    %c0_4 = arith.constant 0 : index
    %c0_5 = arith.constant 0 : index
    %2 = vector.load %arg1[%c0_3, %c0_4, %c0_5] : memref<2x32x324xf32, #tpu.memory_space<vmem>>, vector<2x32x324xf32>
    %cst = arith.constant 0.000000e+00 : f32
    %3 = vector.broadcast %cst : f32 to vector<2x32x324xf32>
    %4 = arith.maximumf %2, %3 : vector<2x32x324xf32>
    %5 = vector.extract_strided_slice %4 {offsets = [0, 0, 0], sizes = [1, 32, 286], strides = [1, 1, 1]} : vector<2x32x324xf32> to vector<1x32x286xf32>
    %6 = vector.shape_cast %5 : vector<1x32x286xf32> to vector<32x286xf32>
    %7 = vector.extract_strided_slice %4 {offsets = [0, 0, 1], sizes = [1, 32, 286], strides = [1, 1, 1]} : vector<2x32x324xf32> to vector<1x32x286xf32>
    %8 = vector.shape_cast %7 : vector<1x32x286xf32> to vector<32x286xf32>
    %9 = vector.extract_strided_slice %4 {offsets = [0, 0, 2], sizes = [1, 32, 286], strides = [1, 1, 1]} : vector<2x32x324xf32> to vector<1x32x286xf32>
    %10 = vector.shape_cast %9 : vector<1x32x286xf32> to vector<32x286xf32>
    %11 = vector.extract_strided_slice %4 {offsets = [0, 0, 18], sizes = [1, 32, 286], strides = [1, 1, 1]} : vector<2x32x324xf32> to vector<1x32x286xf32>
    %12 = vector.shape_cast %11 : vector<1x32x286xf32> to vector<32x286xf32>
    %13 = vector.extract_strided_slice %4 {offsets = [0, 0, 19], sizes = [1, 32, 286], strides = [1, 1, 1]} : vector<2x32x324xf32> to vector<1x32x286xf32>
    %14 = vector.shape_cast %13 : vector<1x32x286xf32> to vector<32x286xf32>
    %15 = vector.extract_strided_slice %4 {offsets = [0, 0, 20], sizes = [1, 32, 286], strides = [1, 1, 1]} : vector<2x32x324xf32> to vector<1x32x286xf32>
    %16 = vector.shape_cast %15 : vector<1x32x286xf32> to vector<32x286xf32>
    %17 = vector.extract_strided_slice %4 {offsets = [0, 0, 36], sizes = [1, 32, 286], strides = [1, 1, 1]} : vector<2x32x324xf32> to vector<1x32x286xf32>
    %18 = vector.shape_cast %17 : vector<1x32x286xf32> to vector<32x286xf32>
    %19 = vector.extract_strided_slice %4 {offsets = [0, 0, 37], sizes = [1, 32, 286], strides = [1, 1, 1]} : vector<2x32x324xf32> to vector<1x32x286xf32>
    %20 = vector.shape_cast %19 : vector<1x32x286xf32> to vector<32x286xf32>
    %21 = vector.extract_strided_slice %4 {offsets = [0, 0, 38], sizes = [1, 32, 286], strides = [1, 1, 1]} : vector<2x32x324xf32> to vector<1x32x286xf32>
    %22 = vector.shape_cast %21 : vector<1x32x286xf32> to vector<32x286xf32>
    %23 = tpu.concatenate %6, %8, %10, %12, %14, %16, %18, %20, %22 in 0 : vector<32x286xf32>, vector<32x286xf32>, vector<32x286xf32>, vector<32x286xf32>, vector<32x286xf32>, vector<32x286xf32>, vector<32x286xf32>, vector<32x286xf32>, vector<32x286xf32> -> vector<288x286xf32>
    %cst_6 = arith.constant dense<0.000000e+00> : vector<16x286xf32>
    %24 = tpu.matmul %0, %23, %cst_6 {dimension_numbers = #tpu.dot_dimension_numbers<[1], [0], [0], [1], [0, 0, 1, 1], [], []>} : vector<16x288xf32>, vector<288x286xf32>, vector<16x286xf32> -> vector<16x286xf32>
    %cst_7 = arith.constant 0.000000e+00 : f32
    %25 = vector.broadcast %cst_7 : f32 to vector<16x286xf32>
    %26 = arith.maximumf %24, %25 : vector<16x286xf32>
    %cst_8 = arith.constant dense<0.000000e+00> : vector<32x286xf32>
    %27 = tpu.matmul %1, %26, %cst_8 {dimension_numbers = #tpu.dot_dimension_numbers<[1], [0], [0], [1], [0, 0, 1, 1], [], []>} : vector<32x16xf32>, vector<16x286xf32>, vector<32x286xf32> -> vector<32x286xf32>
    %28 = vector.extract_strided_slice %2 {offsets = [0, 0, 19], sizes = [1, 32, 286], strides = [1, 1, 1]} : vector<2x32x324xf32> to vector<1x32x286xf32>
    %29 = vector.shape_cast %28 : vector<1x32x286xf32> to vector<32x286xf32>
    %30 = arith.addf %29, %27 : vector<32x286xf32>
    %c0_9 = arith.constant 0 : index
    %c0_10 = arith.constant 0 : index
    %c0_11 = arith.constant 0 : index
    %31 = vector.load %arg4[%c0_9, %c0_10, %c0_11] : memref<2x32x286xf32, #tpu.memory_space<vmem>>, vector<1x32x286xf32>
    %32 = vector.shape_cast %31 : vector<1x32x286xf32> to vector<32x286xf32>
    %33 = vector.shape_cast %30 : vector<32x286xf32> to vector<1x32x286xf32>
    tpu.vector_store %arg4[%c0_9, %c0_10, %c0_11], %33 {strides = array<i32>} : memref<2x32x286xf32, #tpu.memory_space<vmem>>, vector<1x32x286xf32>,
    %34 = vector.extract_strided_slice %4 {offsets = [1, 0, 0], sizes = [1, 32, 286], strides = [1, 1, 1]} : vector<2x32x324xf32> to vector<1x32x286xf32>
    %35 = vector.shape_cast %34 : vector<1x32x286xf32> to vector<32x286xf32>
    %36 = vector.extract_strided_slice %4 {offsets = [1, 0, 1], sizes = [1, 32, 286], strides = [1, 1, 1]} : vector<2x32x324xf32> to vector<1x32x286xf32>
    %37 = vector.shape_cast %36 : vector<1x32x286xf32> to vector<32x286xf32>
    %38 = vector.extract_strided_slice %4 {offsets = [1, 0, 2], sizes = [1, 32, 286], strides = [1, 1, 1]} : vector<2x32x324xf32> to vector<1x32x286xf32>
    %39 = vector.shape_cast %38 : vector<1x32x286xf32> to vector<32x286xf32>
    %40 = vector.extract_strided_slice %4 {offsets = [1, 0, 18], sizes = [1, 32, 286], strides = [1, 1, 1]} : vector<2x32x324xf32> to vector<1x32x286xf32>
    %41 = vector.shape_cast %40 : vector<1x32x286xf32> to vector<32x286xf32>
    %42 = vector.extract_strided_slice %4 {offsets = [1, 0, 19], sizes = [1, 32, 286], strides = [1, 1, 1]} : vector<2x32x324xf32> to vector<1x32x286xf32>
    %43 = vector.shape_cast %42 : vector<1x32x286xf32> to vector<32x286xf32>
    %44 = vector.extract_strided_slice %4 {offsets = [1, 0, 20], sizes = [1, 32, 286], strides = [1, 1, 1]} : vector<2x32x324xf32> to vector<1x32x286xf32>
    %45 = vector.shape_cast %44 : vector<1x32x286xf32> to vector<32x286xf32>
    %46 = vector.extract_strided_slice %4 {offsets = [1, 0, 36], sizes = [1, 32, 286], strides = [1, 1, 1]} : vector<2x32x324xf32> to vector<1x32x286xf32>
    %47 = vector.shape_cast %46 : vector<1x32x286xf32> to vector<32x286xf32>
    %48 = vector.extract_strided_slice %4 {offsets = [1, 0, 37], sizes = [1, 32, 286], strides = [1, 1, 1]} : vector<2x32x324xf32> to vector<1x32x286xf32>
    %49 = vector.shape_cast %48 : vector<1x32x286xf32> to vector<32x286xf32>
    %50 = vector.extract_strided_slice %4 {offsets = [1, 0, 38], sizes = [1, 32, 286], strides = [1, 1, 1]} : vector<2x32x324xf32> to vector<1x32x286xf32>
    %51 = vector.shape_cast %50 : vector<1x32x286xf32> to vector<32x286xf32>
    %52 = tpu.concatenate %35, %37, %39, %41, %43, %45, %47, %49, %51 in 0 : vector<32x286xf32>, vector<32x286xf32>, vector<32x286xf32>, vector<32x286xf32>, vector<32x286xf32>, vector<32x286xf32>, vector<32x286xf32>, vector<32x286xf32>, vector<32x286xf32> -> vector<288x286xf32>
    %cst_12 = arith.constant dense<0.000000e+00> : vector<16x286xf32>
    %53 = tpu.matmul %0, %52, %cst_12 {dimension_numbers = #tpu.dot_dimension_numbers<[1], [0], [0], [1], [0, 0, 1, 1], [], []>} : vector<16x288xf32>, vector<288x286xf32>, vector<16x286xf32> -> vector<16x286xf32>
    %cst_13 = arith.constant 0.000000e+00 : f32
    %54 = vector.broadcast %cst_13 : f32 to vector<16x286xf32>
    %55 = arith.maximumf %53, %54 : vector<16x286xf32>
    %cst_14 = arith.constant dense<0.000000e+00> : vector<32x286xf32>
    %56 = tpu.matmul %1, %55, %cst_14 {dimension_numbers = #tpu.dot_dimension_numbers<[1], [0], [0], [1], [0, 0, 1, 1], [], []>} : vector<32x16xf32>, vector<16x286xf32>, vector<32x286xf32> -> vector<32x286xf32>
    %57 = vector.extract_strided_slice %2 {offsets = [1, 0, 19], sizes = [1, 32, 286], strides = [1, 1, 1]} : vector<2x32x324xf32> to vector<1x32x286xf32>
    %58 = vector.shape_cast %57 : vector<1x32x286xf32> to vector<32x286xf32>
    %59 = arith.addf %58, %56 : vector<32x286xf32>
    %c1 = arith.constant 1 : index
    %c0_15 = arith.constant 0 : index
    %c0_16 = arith.constant 0 : index
    %60 = vector.load %arg4[%c1, %c0_15, %c0_16] : memref<2x32x286xf32, #tpu.memory_space<vmem>>, vector<1x32x286xf32>
    %61 = vector.shape_cast %60 : vector<1x32x286xf32> to vector<32x286xf32>
    %62 = vector.shape_cast %59 : vector<32x286xf32> to vector<1x32x286xf32>
    tpu.vector_store %arg4[%c1, %c0_15, %c0_16], %62 {strides = array<i32>} : memref<2x32x286xf32, #tpu.memory_space<vmem>>, vector<1x32x286xf32>,
    return
  }
  func.func @transform_0(%arg0: i32) -> (i32, i32, i32) {
    %c0_i32 = arith.constant 0 : i32
    %c0_i32_0 = arith.constant 0 : i32
    %c0_i32_1 = arith.constant 0 : i32
    return %arg0, %c0_i32, %c0_i32_0 : i32, i32, i32
  }
  func.func @transform_1(%arg0: i32) -> (i32, i32) {
    %c0_i32 = arith.constant 0 : i32
    %c0_i32_0 = arith.constant 0 : i32
    %c0_i32_1 = arith.constant 0 : i32
    return %c0_i32, %c0_i32_0 : i32, i32
  }
  func.func @transform_2(%arg0: i32) -> (i32, i32) {
    %c0_i32 = arith.constant 0 : i32
    %c0_i32_0 = arith.constant 0 : i32
    %c0_i32_1 = arith.constant 0 : i32
    return %c0_i32, %c0_i32_0 : i32, i32
  }
  func.func @transform_3(%arg0: i32) -> (i32, i32, i32) {
    %c0_i32 = arith.constant 0 : i32
    %c0_i32_0 = arith.constant 0 : i32
    %c0_i32_1 = arith.constant 0 : i32
    return %arg0, %c0_i32, %c0_i32_0 : i32, i32, i32
  }
}

</mosaic_0001>

<llo_original>
// kernel: tpu_custom_call.1
$region0: #{tpu_custom_call.1}
  #allocation0 [shape = 'u32[]', space=smem, size = 0x4, offset = 0x4, fixed_abs, tag = 'smem constant byte address 0x4 - core index']
  #allocation1 [shape = 'u32[144,128]{1,0:T(1,128)}', space=vmem, size = 0x12000, scoped, tag = 'internal scratch']
  %s0 = inlined_call_operand.hbm [shape: f32[2,32,324], index: 0, kind: input, shape index: {}]
  %s1 = inlined_call_operand.vmem [shape: f32[16,288], index: 1, kind: input, shape index: {}]
  %s2 = inlined_call_operand.vmem [shape: f32[32,16], index: 2, kind: input, shape index: {}]
  %s3 = inlined_call_operand.hbm [shape: f32[2,32,286], index: 3, kind: output, shape index: {}]
  %s4 = sld [smem:[#allocation0]]
  $region26: #{tpu_custom_call.1} parent=0
    _
  %s6 = ssub.s32 1, %s4
  %s7 = scalar_select 0, %s6, %s4
  $region1: #{tpu_custom_call.1} parent=0
    #allocation2 [shape = 'u8[98304]{0}', space=vmem, size = 0x18000, scoped, tag = 'input window, operand 0, single buffered']
    #allocation3 [shape = 's32[1]{0}', space=sflag, size = 0x4, scoped, tag = 'scoped memory for tpu_custom_call.1']
    #allocation4 [shape = 's32[1]{0}', space=sflag, size = 0x4, scoped, tag = 'scoped memory for tpu_custom_call.1']
    #allocation5 [shape = 'u8[98304]{0}', space=vmem, size = 0x18000, scoped, tag = 'output window, operand 0, single buffered']
    %8 = vsyncpa [#allocation3], 0
    %9 = vsyncpa [#allocation4], 0
    // Predicated region
    $region2: #{tpu_custom_call.1} parent=1 // pred_check
      _
    $region3: #{tpu_custom_call.1} parent=1 // pred_check_branch
      %11 = sbr.rel (0) target = $region5
    $region4: #{tpu_custom_call.1} parent=1 // pred_region
      %s13 = ssub.s32 3072, 3072
      %14 = vsyncadd [#allocation3], %s13
      %s15 = sshll.u32 [#allocation2], 4
      %s16 = int_to_ptr.vmem [resolvable:$true] %s15
      %21 = dma.hbm_to_vmem [thread:$0]  %s0, 3072, %s16, [#allocation3], 384, 384, 24
    $region5: #{tpu_custom_call.1} parent=1 // pred_fallthru
      _
    // Predicated region
    $region6: #{tpu_custom_call.1} parent=1 // pred_check
      _
    $region7: #{tpu_custom_call.1} parent=1 // pred_check_branch
      %23 = sbr.rel (0) target = $region9
    $region8: #{tpu_custom_call.1} parent=1 // pred_region
      _
    $region9: #{tpu_custom_call.1} parent=1 // pred_fallthru
      _
    // Predicated region
    $region10: #{tpu_custom_call.1} parent=1 // pred_check
      _
    $region11: #{tpu_custom_call.1} parent=1 // pred_check_branch
      %25 = sbr.rel (0) target = $region13
    $region12: #{tpu_custom_call.1} parent=1 // pred_region
      _
    $region13: #{tpu_custom_call.1} parent=1 // pred_fallthru
      _
    // Predicated region
    $region14: #{tpu_custom_call.1} parent=1 // pred_check
      _
    $region15: #{tpu_custom_call.1} parent=1 // pred_check_branch
      %27 = sbr.rel (0) target = $region17
    $region16: #{tpu_custom_call.1} parent=1 // pred_region
      %28 = dma.done [#allocation3], 3072
    $region17: #{tpu_custom_call.1} parent=1 // pred_fallthru
      _
    %v29 = vld [vmem:[%s1] sm:$0xff]
    %v30 = vld [vmem:[%s1 + $0x8] sm:$0xff]
    %v31 = vld [vmem:[%s1 + $0x10] sm:$0xff]
    %v32 = vld [vmem:[%s1 + $0x18] sm:$0xff]
    %v33 = vld [vmem:[%s1 + $0x20] sm:$0xff]
    %v34 = vld [vmem:[%s1 + $0x28] sm:$0xff]
    %v35 = vld [vmem:[%s2] sm:$0xff]
    %v36 = vld [vmem:[%s2 + $0x8] sm:$0xff]
    %v37 = vld [vmem:[%s2 + $0x10] sm:$0xff]
    %v38 = vld [vmem:[%s2 + $0x18] sm:$0xff]
    %v39 = vld [vmem:[#allocation2] sm:$0xff]
    %v40 = vld [vmem:[#allocation2 + $0x8] sm:$0xff]
    %v41 = vld [vmem:[#allocation2 + $0x10] sm:$0xff]
    %v42 = vld [vmem:[#allocation2 + $0x18] sm:$0xff]
    %v43 = vld [vmem:[#allocation2 + $0x20] sm:$0xff]
    %v44 = vld [vmem:[#allocation2 + $0x28] sm:$0xff]
    %v45 = vld [vmem:[#allocation2 + $0x30] sm:$0xff]
    %v46 = vld [vmem:[#allocation2 + $0x38] sm:$0xff]
    %v47 = vld [vmem:[#allocation2 + $0x40] sm:$0xff]
    %v48 = vld [vmem:[#allocation2 + $0x48] sm:$0xff]
    %v49 = vld [vmem:[#allocation2 + $0x50] sm:$0xff]
    %v50 = vld [vmem:[#allocation2 + $0x58] sm:$0xff]
    %v51 = vld [vmem:[#allocation2 + $0x60] sm:$0xff]
    %v52 = vld [vmem:[#allocation2 + $0x68] sm:$0xff]
    %v53 = vld [vmem:[#allocation2 + $0x70] sm:$0xff]
    %v54 = vld [vmem:[#allocation2 + $0x78] sm:$0xff]
    %v55 = vld [vmem:[#allocation2 + $0x80] sm:$0xff]
    %v56 = vld [vmem:[#allocation2 + $0x88] sm:$0xff]
    %v57 = vld [vmem:[#allocation2 + $0x90] sm:$0xff]
    %v58 = vld [vmem:[#allocation2 + $0x98] sm:$0xff]
    %v59 = vld [vmem:[#allocation2 + $0xa0] sm:$0xff]
    %v60 = vld [vmem:[#allocation2 + $0xa8] sm:$0xff]
    %v61 = vld [vmem:[#allocation2 + $0xb0] sm:$0xff]
    %v62 = vld [vmem:[#allocation2 + $0xb8] sm:$0xff]
    %v63 = vmax.f32 %v39, 0.0
    %v64 = vmax.f32 %v40, 0.0
    %v65 = vmax.f32 %v41, 0.0
    %v66 = vmax.f32 %v42, 0.0
    %v67 = vmax.f32 %v43, 0.0
    %v68 = vmax.f32 %v44, 0.0
    %v69 = vmax.f32 %v45, 0.0
    %v70 = vmax.f32 %v46, 0.0
    %v71 = vmax.f32 %v47, 0.0
    %v72 = vmax.f32 %v48, 0.0
    %v73 = vmax.f32 %v49, 0.0
    %v74 = vmax.f32 %v50, 0.0
    %v75 = vmax.f32 %v51, 0.0
    %v76 = vmax.f32 %v52, 0.0
    %v77 = vmax.f32 %v53, 0.0
    %v78 = vmax.f32 %v54, 0.0
    %v79 = vmax.f32 %v55, 0.0
    %v80 = vmax.f32 %v56, 0.0
    %v81 = vmax.f32 %v57, 0.0
    %v82 = vmax.f32 %v58, 0.0
    %v83 = vmax.f32 %v59, 0.0
    %v84 = vmax.f32 %v60, 0.0
    %v85 = vmax.f32 %v61, 0.0
    %v86 = vmax.f32 %v62, 0.0
    %99 = vrot.lane.b32.xlu0 %v63, 127
    %v100 = vpop.permute.xlu0 %99
    %101 = vrot.lane.b32.xlu0 %v64, 127
    %v102 = vpop.permute.xlu0 %101
    %103 = vrot.lane.b32.xlu0 %v65, 127
    %v104 = vpop.permute.xlu0 %103
    %105 = vrot.lane.b32.xlu0 %v66, 127
    %v106 = vpop.permute.xlu0 %105
    %107 = vrot.lane.b32.xlu0 %v67, 127
    %v108 = vpop.permute.xlu0 %107
    %109 = vrot.lane.b32.xlu0 %v68, 127
    %v110 = vpop.permute.xlu0 %109
    %111 = vrot.lane.b32.xlu0 %v69, 127
    %v112 = vpop.permute.xlu0 %111
    %113 = vrot.lane.b32.xlu0 %v70, 127
    %v114 = vpop.permute.xlu0 %113
    %115 = vrot.lane.b32.xlu0 %v71, 127
    %v116 = vpop.permute.xlu0 %115
    %117 = vrot.lane.b32.xlu0 %v72, 127
    %v118 = vpop.permute.xlu0 %117
    %119 = vrot.lane.b32.xlu0 %v73, 127
    %v120 = vpop.permute.xlu0 %119
    %121 = vrot.lane.b32.xlu0 %v74, 127
    %v122 = vpop.permute.xlu0 %121
    %vm123 = vcmask 1039360
    %v124 = vsel %vm123, %v100, %v102
    %v125 = vsel %vm123, %v102, %v104
    %v126 = vsel %vm123, %v106, %v108
    %v127 = vsel %vm123, %v108, %v110
    %v128 = vsel %vm123, %v112, %v114
    %v129 = vsel %vm123, %v114, %v116
    %v130 = vsel %vm123, %v118, %v120
    %v131 = vsel %vm123, %v120, %v122
    %144 = vrot.lane.b32.xlu0 %v63, 126
    %v145 = vpop.permute.xlu0 %144
    %146 = vrot.lane.b32.xlu0 %v64, 126
    %v147 = vpop.permute.xlu0 %146
    %148 = vrot.lane.b32.xlu0 %v65, 126
    %v149 = vpop.permute.xlu0 %148
    %150 = vrot.lane.b32.xlu0 %v66, 126
    %v151 = vpop.permute.xlu0 %150
    %152 = vrot.lane.b32.xlu0 %v67, 126
    %v153 = vpop.permute.xlu0 %152
    %154 = vrot.lane.b32.xlu0 %v68, 126
    %v155 = vpop.permute.xlu0 %154
    %156 = vrot.lane.b32.xlu0 %v69, 126
    %v157 = vpop.permute.xlu0 %156
    %158 = vrot.lane.b32.xlu0 %v70, 126
    %v159 = vpop.permute.xlu0 %158
    %160 = vrot.lane.b32.xlu0 %v71, 126
    %v161 = vpop.permute.xlu0 %160
    %162 = vrot.lane.b32.xlu0 %v72, 126
    %v163 = vpop.permute.xlu0 %162
    %164 = vrot.lane.b32.xlu0 %v73, 126
    %v165 = vpop.permute.xlu0 %164
    %166 = vrot.lane.b32.xlu0 %v74, 126
    %v167 = vpop.permute.xlu0 %166
    %vm168 = vcmask 1031168
    %v169 = vsel %vm168, %v145, %v147
    %v170 = vsel %vm168, %v147, %v149
    %v171 = vsel %vm168, %v151, %v153
    %v172 = vsel %vm168, %v153, %v155
    %v173 = vsel %vm168, %v157, %v159
    %v174 = vsel %vm168, %v159, %v161
    %v175 = vsel %vm168, %v163, %v165
    %v176 = vsel %vm168, %v165, %v167
    %189 = vrot.lane.b32.xlu0 %v63, 110
    %v190 = vpop.permute.xlu0 %189
    %191 = vrot.lane.b32.xlu0 %v64, 110
    %v192 = vpop.permute.xlu0 %191
    %193 = vrot.lane.b32.xlu0 %v65, 110
    %v194 = vpop.permute.xlu0 %193
    %195 = vrot.lane.b32.xlu0 %v66, 110
    %v196 = vpop.permute.xlu0 %195
    %197 = vrot.lane.b32.xlu0 %v67, 110
    %v198 = vpop.permute.xlu0 %197
    %199 = vrot.lane.b32.xlu0 %v68, 110
    %v200 = vpop.permute.xlu0 %199
    %201 = vrot.lane.b32.xlu0 %v69, 110
    %v202 = vpop.permute.xlu0 %201
    %203 = vrot.lane.b32.xlu0 %v70, 110
    %v204 = vpop.permute.xlu0 %203
    %205 = vrot.lane.b32.xlu0 %v71, 110
    %v206 = vpop.permute.xlu0 %205
    %207 = vrot.lane.b32.xlu0 %v72, 110
    %v208 = vpop.permute.xlu0 %207
    %209 = vrot.lane.b32.xlu0 %v73, 110
    %v210 = vpop.permute.xlu0 %209
    %211 = vrot.lane.b32.xlu0 %v74, 110
    %v212 = vpop.permute.xlu0 %211
    %vm213 = vcmask 900096
    %v214 = vsel %vm213, %v190, %v192
    %v215 = vsel %vm213, %v192, %v194
    %v216 = vsel %vm213, %v196, %v198
    %v217 = vsel %vm213, %v198, %v200
    %v218 = vsel %vm213, %v202, %v204
    %v219 = vsel %vm213, %v204, %v206
    %v220 = vsel %vm213, %v208, %v210
    %v221 = vsel %vm213, %v210, %v212
    %234 = vrot.lane.b32.xlu0 %v63, 109
    %v235 = vpop.permute.xlu0 %234
    %236 = vrot.lane.b32.xlu0 %v64, 109
    %v237 = vpop.permute.xlu0 %236
    %238 = vrot.lane.b32.xlu0 %v65, 109
    %v239 = vpop.permute.xlu0 %238
    %240 = vrot.lane.b32.xlu0 %v66, 109
    %v241 = vpop.permute.xlu0 %240
    %242 = vrot.lane.b32.xlu0 %v67, 109
    %v243 = vpop.permute.xlu0 %242
    %244 = vrot.lane.b32.xlu0 %v68, 109
    %v245 = vpop.permute.xlu0 %244
    %246 = vrot.lane.b32.xlu0 %v69, 109
    %v247 = vpop.permute.xlu0 %246
    %248 = vrot.lane.b32.xlu0 %v70, 109
    %v249 = vpop.permute.xlu0 %248
    %250 = vrot.lane.b32.xlu0 %v71, 109
    %v251 = vpop.permute.xlu0 %250
    %252 = vrot.lane.b32.xlu0 %v72, 109
    %v253 = vpop.permute.xlu0 %252
    %254 = vrot.lane.b32.xlu0 %v73, 109
    %v255 = vpop.permute.xlu0 %254
    %256 = vrot.lane.b32.xlu0 %v74, 109
    %v257 = vpop.permute.xlu0 %256
    %vm258 = vcmask 891904
    %v259 = vsel %vm258, %v235, %v237
    %v260 = vsel %vm258, %v237, %v239
    %v261 = vsel %vm258, %v241, %v243
    %v262 = vsel %vm258, %v243, %v245
    %v263 = vsel %vm258, %v247, %v249
    %v264 = vsel %vm258, %v249, %v251
    %v265 = vsel %vm258, %v253, %v255
    %v266 = vsel %vm258, %v255, %v257
    %279 = vrot.lane.b32.xlu0 %v63, 108
    %v280 = vpop.permute.xlu0 %279
    %281 = vrot.lane.b32.xlu0 %v64, 108
    %v282 = vpop.permute.xlu0 %281
    %283 = vrot.lane.b32.xlu0 %v65, 108
    %v284 = vpop.permute.xlu0 %283
    %285 = vrot.lane.b32.xlu0 %v66, 108
    %v286 = vpop.permute.xlu0 %285
    %287 = vrot.lane.b32.xlu0 %v67, 108
    %v288 = vpop.permute.xlu0 %287
    %289 = vrot.lane.b32.xlu0 %v68, 108
    %v290 = vpop.permute.xlu0 %289
    %291 = vrot.lane.b32.xlu0 %v69, 108
    %v292 = vpop.permute.xlu0 %291
    %293 = vrot.lane.b32.xlu0 %v70, 108
    %v294 = vpop.permute.xlu0 %293
    %295 = vrot.lane.b32.xlu0 %v71, 108
    %v296 = vpop.permute.xlu0 %295
    %297 = vrot.lane.b32.xlu0 %v72, 108
    %v298 = vpop.permute.xlu0 %297
    %299 = vrot.lane.b32.xlu0 %v73, 108
    %v300 = vpop.permute.xlu0 %299
    %301 = vrot.lane.b32.xlu0 %v74, 108
    %v302 = vpop.permute.xlu0 %301
    %vm303 = vcmask 883712
    %v304 = vsel %vm303, %v280, %v282
    %v305 = vsel %vm303, %v282, %v284
    %v306 = vsel %vm303, %v286, %v288
    %v307 = vsel %vm303, %v288, %v290
    %v308 = vsel %vm303, %v292, %v294
    %v309 = vsel %vm303, %v294, %v296
    %v310 = vsel %vm303, %v298, %v300
    %v311 = vsel %vm303, %v300, %v302
    %324 = vrot.lane.b32.xlu0 %v63, 92
    %v325 = vpop.permute.xlu0 %324
    %326 = vrot.lane.b32.xlu0 %v64, 92
    %v327 = vpop.permute.xlu0 %326
    %328 = vrot.lane.b32.xlu0 %v65, 92
    %v329 = vpop.permute.xlu0 %328
    %330 = vrot.lane.b32.xlu0 %v66, 92
    %v331 = vpop.permute.xlu0 %330
    %332 = vrot.lane.b32.xlu0 %v67, 92
    %v333 = vpop.permute.xlu0 %332
    %334 = vrot.lane.b32.xlu0 %v68, 92
    %v335 = vpop.permute.xlu0 %334
    %336 = vrot.lane.b32.xlu0 %v69, 92
    %v337 = vpop.permute.xlu0 %336
    %338 = vrot.lane.b32.xlu0 %v70, 92
    %v339 = vpop.permute.xlu0 %338
    %340 = vrot.lane.b32.xlu0 %v71, 92
    %v341 = vpop.permute.xlu0 %340
    %342 = vrot.lane.b32.xlu0 %v72, 92
    %v343 = vpop.permute.xlu0 %342
    %344 = vrot.lane.b32.xlu0 %v73, 92
    %v345 = vpop.permute.xlu0 %344
    %346 = vrot.lane.b32.xlu0 %v74, 92
    %v347 = vpop.permute.xlu0 %346
    %vm348 = vcmask 752640
    %v349 = vsel %vm348, %v325, %v327
    %v350 = vsel %vm348, %v327, %v329
    %v351 = vsel %vm348, %v331, %v333
    %v352 = vsel %vm348, %v333, %v335
    %v353 = vsel %vm348, %v337, %v339
    %v354 = vsel %vm348, %v339, %v341
    %v355 = vsel %vm348, %v343, %v345
    %v356 = vsel %vm348, %v345, %v347
    %369 = vrot.lane.b32.xlu0 %v63, 91
    %v370 = vpop.permute.xlu0 %369
    %371 = vrot.lane.b32.xlu0 %v64, 91
    %v372 = vpop.permute.xlu0 %371
    %373 = vrot.lane.b32.xlu0 %v65, 91
    %v374 = vpop.permute.xlu0 %373
    %375 = vrot.lane.b32.xlu0 %v66, 91
    %v376 = vpop.permute.xlu0 %375
    %377 = vrot.lane.b32.xlu0 %v67, 91
    %v378 = vpop.permute.xlu0 %377
    %379 = vrot.lane.b32.xlu0 %v68, 91
    %v380 = vpop.permute.xlu0 %379
    %381 = vrot.lane.b32.xlu0 %v69, 91
    %v382 = vpop.permute.xlu0 %381
    %383 = vrot.lane.b32.xlu0 %v70, 91
    %v384 = vpop.permute.xlu0 %383
    %385 = vrot.lane.b32.xlu0 %v71, 91
    %v386 = vpop.permute.xlu0 %385
    %387 = vrot.lane.b32.xlu0 %v72, 91
    %v388 = vpop.permute.xlu0 %387
    %389 = vrot.lane.b32.xlu0 %v73, 91
    %v390 = vpop.permute.xlu0 %389
    %391 = vrot.lane.b32.xlu0 %v74, 91
    %v392 = vpop.permute.xlu0 %391
    %vm393 = vcmask 744448
    %v394 = vsel %vm393, %v370, %v372
    %v395 = vsel %vm393, %v372, %v374
    %v396 = vsel %vm393, %v376, %v378
    %v397 = vsel %vm393, %v378, %v380
    %v398 = vsel %vm393, %v382, %v384
    %v399 = vsel %vm393, %v384, %v386
    %v400 = vsel %vm393, %v388, %v390
    %v401 = vsel %vm393, %v390, %v392
    %414 = vrot.lane.b32.xlu0 %v63, 90
    %v415 = vpop.permute.xlu0 %414
    %416 = vrot.lane.b32.xlu0 %v64, 90
    %v417 = vpop.permute.xlu0 %416
    %418 = vrot.lane.b32.xlu0 %v65, 90
    %v419 = vpop.permute.xlu0 %418
    %420 = vrot.lane.b32.xlu0 %v66, 90
    %v421 = vpop.permute.xlu0 %420
    %422 = vrot.lane.b32.xlu0 %v67, 90
    %v423 = vpop.permute.xlu0 %422
    %424 = vrot.lane.b32.xlu0 %v68, 90
    %v425 = vpop.permute.xlu0 %424
    %426 = vrot.lane.b32.xlu0 %v69, 90
    %v427 = vpop.permute.xlu0 %426
    %428 = vrot.lane.b32.xlu0 %v70, 90
    %v429 = vpop.permute.xlu0 %428
    %430 = vrot.lane.b32.xlu0 %v71, 90
    %v431 = vpop.permute.xlu0 %430
    %432 = vrot.lane.b32.xlu0 %v72, 90
    %v433 = vpop.permute.xlu0 %432
    %434 = vrot.lane.b32.xlu0 %v73, 90
    %v435 = vpop.permute.xlu0 %434
    %436 = vrot.lane.b32.xlu0 %v74, 90
    %v437 = vpop.permute.xlu0 %436
    %vm438 = vcmask 736256
    %v439 = vsel %vm438, %v415, %v417
    %v440 = vsel %vm438, %v417, %v419
    %v441 = vsel %vm438, %v421, %v423
    %v442 = vsel %vm438, %v423, %v425
    %v443 = vsel %vm438, %v427, %v429
    %v444 = vsel %vm438, %v429, %v431
    %v445 = vsel %vm438, %v433, %v435
    %v446 = vsel %vm438, %v435, %v437
    %vm459 = vcmask 261120
    %v461 = vsel %vm459, %v31, 0
    %v464 = vsel %vm459, %v34, 0
    %466 = vmatprep.subr.mxu0 %v64
    %467 = vmatpush1.msra.mxu0 %v63
    %468 = vmatprep.subr.mxu0 %v67
    %469 = vmatpush1.msra.mxu0 %v66
    %470 = vmatprep.subr.mxu0 %v70
    %471 = vmatpush1.msra.mxu0 %v69
    %472 = vmatprep.subr.mxu0 %v73
    %473 = vmatpush1.msra.mxu0 %v72
    %474 = vmatprep.subr.mxu0 %v125
    %475 = vmatpush1.msra.mxu0 %v124
    %476 = vmatprep.subr.mxu0 %v127
    %477 = vmatpush1.msra.mxu0 %v126
    %478 = vmatprep.subr.mxu0 %v129
    %479 = vmatpush1.msra.mxu0 %v128
    %480 = vmatprep.subr.mxu0 %v131
    %481 = vmatpush1.msra.mxu0 %v130
    %482 = vmatprep.subr.mxu0 %v170
    %483 = vmatpush1.msra.mxu0 %v169
    %484 = vmatprep.subr.mxu0 %v172
    %485 = vmatpush1.msra.mxu0 %v171
    %486 = vmatprep.subr.mxu0 %v174
    %487 = vmatpush1.msra.mxu0 %v173
    %488 = vmatprep.subr.mxu0 %v176
    %489 = vmatpush1.msra.mxu0 %v175
    %490 = vmatprep.subr.mxu0 %v215
    %491 = vmatpush1.msra.mxu0 %v214
    %492 = vmatprep.subr.mxu0 %v217
    %493 = vmatpush1.msra.mxu0 %v216
    %494 = vmatprep.subr.mxu0 %v219
    %495 = vmatpush1.msra.mxu0 %v218
    %496 = vmatprep.subr.mxu0 %v221
    %497 = vmatpush1.msra.mxu0 %v220
    %498 = vmatprep.subr.mxu0 %v260
    %499 = vmatpush1.msra.mxu0 %v259
    %500 = vmatprep.subr.mxu0 %v262
    %501 = vmatpush1.msra.mxu0 %v261
    %502 = vmatprep.subr.mxu0 %v264
    %503 = vmatpush1.msra.mxu0 %v263
    %504 = vmatprep.subr.mxu0 %v266
    %505 = vmatpush1.msra.mxu0 %v265
    %506 = vmatprep.subr.mxu0 %v305
    %507 = vmatpush1.msra.mxu0 %v304
    %508 = vmatprep.subr.mxu0 %v307
    %509 = vmatpush1.msra.mxu0 %v306
    %510 = vmatprep.subr.mxu0 %v309
    %511 = vmatpush1.msra.mxu0 %v308
    %512 = vmatprep.subr.mxu0 %v311
    %513 = vmatpush1.msra.mxu0 %v310
    %514 = vmatprep.subr.mxu0 %v350
    %515 = vmatpush1.msra.mxu0 %v349
    %516 = vmatprep.subr.mxu0 %v352
    %517 = vmatpush1.msra.mxu0 %v351
    %518 = vmatprep.subr.mxu0 %v354
    %519 = vmatpush1.msra.mxu0 %v353
    %520 = vmatprep.subr.mxu0 %v356
    %521 = vmatpush1.msra.mxu0 %v355
    %522 = vmatprep.subr.mxu0 %v395
    %523 = vmatpush1.msra.mxu0 %v394
    %524 = vmatprep.subr.mxu0 %v397
    %525 = vmatpush1.msra.mxu0 %v396
    %526 = vmatprep.subr.mxu0 %v399
    %527 = vmatpush1.msra.mxu0 %v398
    %528 = vmatprep.subr.mxu0 %v401
    %529 = vmatpush1.msra.mxu0 %v400
    %530 = vmatprep.mubr.f32.mxu0 %v30
    %531 = vmatmul.mubr.f32.gmra.mrb[0].mxu0 %v29
    %v532 = vpop.f32.mrb[0].mxu0
    %v533 = vadd.f32 0.0, %v532
    %v534 = vpop.f32.mrb[0].mxu0
    %v535 = vadd.f32 0.0, %v534
    %536 = vmatprep.mubr.f32.mxu0 %v33
    %537 = vmatmul.mubr.f32.gmra.mrb[0].mxu0 %v32
    %v538 = vpop.f32.mrb[0].mxu0
    %v539 = vadd.f32 0.0, %v538
    %v540 = vpop.f32.mrb[0].mxu0
    %v541 = vadd.f32 0.0, %v540
    %542 = vdwg.mxu0
    %543 = vmatprep.subr.mxu0 %v440
    %544 = vmatpush1.msra.mxu0 %v439
    %545 = vmatprep.subr.mxu0 %v442
    %546 = vmatpush1.msra.mxu0 %v441
    %547 = vmatprep.subr.mxu0 %v444
    %548 = vmatpush1.msra.mxu0 %v443
    %549 = vmatprep.subr.mxu0 %v446
    %550 = vmatpush1.msra.mxu0 %v445
    %551 = vmatprep.subr.mxu0 0.0
    %552 = vmatpush1.msra.mxu0 0.0
    %553 = vmatprep.subr.mxu0 0.0
    %554 = vmatpush1.msra.mxu0 0.0
    %555 = vmatprep.subr.mxu0 0.0
    %556 = vmatpush1.msra.mxu0 0.0
    %557 = vmatprep.subr.mxu0 0.0
    %558 = vmatpush1.msra.mxu0 0.0
    %559 = vmatprep.subr.mxu0 0.0
    %560 = vmatpush1.msra.mxu0 0.0
    %561 = vmatprep.subr.mxu0 0.0
    %562 = vmatpush1.msra.mxu0 0.0
    %563 = vmatprep.subr.mxu0 0.0
    %564 = vmatpush1.msra.mxu0 0.0
    %565 = vmatprep.subr.mxu0 0.0
    %566 = vmatpush1.msra.mxu0 0.0
    %567 = vmatprep.subr.mxu0 0.0
    %568 = vmatpush1.msra.mxu0 0.0
    %569 = vmatprep.subr.mxu0 0.0
    %570 = vmatpush1.msra.mxu0 0.0
    %571 = vmatprep.subr.mxu0 0.0
    %572 = vmatpush1.msra.mxu0 0.0
    %573 = vmatprep.subr.mxu0 0.0
    %574 = vmatpush1.msra.mxu0 0.0
    %575 = vmatprep.subr.mxu0 0.0
    %576 = vmatpush1.msra.mxu0 0.0
    %577 = vmatprep.subr.mxu0 0.0
    %578 = vmatpush1.msra.mxu0 0.0
    %579 = vmatprep.subr.mxu0 0.0
    %580 = vmatpush1.msra.mxu0 0.0
    %581 = vmatprep.subr.mxu0 0.0
    %582 = vmatpush1.msra.mxu0 0.0
    %583 = vmatprep.subr.mxu0 0.0
    %584 = vmatpush1.msra.mxu0 0.0
    %585 = vmatprep.subr.mxu0 0.0
    %586 = vmatpush1.msra.mxu0 0.0
    %587 = vmatprep.subr.mxu0 0.0
    %588 = vmatpush1.msra.mxu0 0.0
    %589 = vmatprep.subr.mxu0 0.0
    %590 = vmatpush1.msra.mxu0 0.0
    %591 = vmatprep.subr.mxu0 0.0
    %592 = vmatpush1.msra.mxu0 0.0
    %593 = vmatprep.subr.mxu0 0.0
    %594 = vmatpush1.msra.mxu0 0.0
    %595 = vmatprep.subr.mxu0 0.0
    %596 = vmatpush1.msra.mxu0 0.0
    %597 = vmatprep.subr.mxu0 0.0
    %598 = vmatpush1.msra.mxu0 0.0
    %599 = vmatprep.subr.mxu0 0.0
    %600 = vmatpush1.msra.mxu0 0.0
    %601 = vmatprep.subr.mxu0 0.0
    %602 = vmatpush1.msra.mxu0 0.0
    %603 = vmatprep.subr.mxu0 0.0
    %604 = vmatpush1.msra.mxu0 0.0
    %605 = vmatprep.subr.mxu0 0.0
    %606 = vmatpush1.msra.mxu0 0.0
    %607 = vmatprep.mubr.f32.mxu0 0.0
    %608 = vmatmul.mubr.f32.gmra.mrb[0].mxu0 %v461
    %v609 = vpop.f32.mrb[0].mxu0
    %v610 = vadd.f32 %v533, %v609
    %v611 = vpop.f32.mrb[0].mxu0
    %v612 = vadd.f32 %v535, %v611
    %613 = vmatprep.mubr.f32.mxu0 0.0
    %614 = vmatmul.mubr.f32.gmra.mrb[0].mxu0 %v464
    %v615 = vpop.f32.mrb[0].mxu0
    %v616 = vadd.f32 %v539, %v615
    %v617 = vpop.f32.mrb[0].mxu0
    %v618 = vadd.f32 %v541, %v617
    %619 = vdwg.mxu0
    %620 = vmatprep.subr.mxu0 0.0
    %621 = vmatpush1.msra.mxu0 %v65
    %622 = vmatprep.subr.mxu0 0.0
    %623 = vmatpush1.msra.mxu0 %v68
    %624 = vmatprep.subr.mxu0 0.0
    %625 = vmatpush1.msra.mxu0 %v71
    %626 = vmatprep.subr.mxu0 0.0
    %627 = vmatpush1.msra.mxu0 %v74
    %628 = vmatprep.subr.mxu0 0.0
    %629 = vmatpush1.msra.mxu0 %v104
    %630 = vmatprep.subr.mxu0 0.0
    %631 = vmatpush1.msra.mxu0 %v110
    %632 = vmatprep.subr.mxu0 0.0
    %633 = vmatpush1.msra.mxu0 %v116
    %634 = vmatprep.subr.mxu0 0.0
    %635 = vmatpush1.msra.mxu0 %v122
    %636 = vmatprep.subr.mxu0 0.0
    %637 = vmatpush1.msra.mxu0 %v149
    %638 = vmatprep.subr.mxu0 0.0
    %639 = vmatpush1.msra.mxu0 %v155
    %640 = vmatprep.subr.mxu0 0.0
    %641 = vmatpush1.msra.mxu0 %v161
    %642 = vmatprep.subr.mxu0 0.0
    %643 = vmatpush1.msra.mxu0 %v167
    %644 = vmatprep.subr.mxu0 0.0
    %645 = vmatpush1.msra.mxu0 %v194
    %646 = vmatprep.subr.mxu0 0.0
    %647 = vmatpush1.msra.mxu0 %v200
    %648 = vmatprep.subr.mxu0 0.0
    %649 = vmatpush1.msra.mxu0 %v206
    %650 = vmatprep.subr.mxu0 0.0
    %651 = vmatpush1.msra.mxu0 %v212
    %652 = vmatprep.subr.mxu0 0.0
    %653 = vmatpush1.msra.mxu0 %v239
    %654 = vmatprep.subr.mxu0 0.0
    %655 = vmatpush1.msra.mxu0 %v245
    %656 = vmatprep.subr.mxu0 0.0
    %657 = vmatpush1.msra.mxu0 %v251
    %658 = vmatprep.subr.mxu0 0.0
    %659 = vmatpush1.msra.mxu0 %v257
    %660 = vmatprep.subr.mxu0 0.0
    %661 = vmatpush1.msra.mxu0 %v284
    %662 = vmatprep.subr.mxu0 0.0
    %663 = vmatpush1.msra.mxu0 %v290
    %664 = vmatprep.subr.mxu0 0.0
    %665 = vmatpush1.msra.mxu0 %v296
    %666 = vmatprep.subr.mxu0 0.0
    %667 = vmatpush1.msra.mxu0 %v302
    %668 = vmatprep.subr.mxu0 0.0
    %669 = vmatpush1.msra.mxu0 %v329
    %670 = vmatprep.subr.mxu0 0.0
    %671 = vmatpush1.msra.mxu0 %v335
    %672 = vmatprep.subr.mxu0 0.0
    %673 = vmatpush1.msra.mxu0 %v341
    %674 = vmatprep.subr.mxu0 0.0
    %675 = vmatpush1.msra.mxu0 %v347
    %676 = vmatprep.subr.mxu0 0.0
    %677 = vmatpush1.msra.mxu0 %v374
    %678 = vmatprep.subr.mxu0 0.0
    %679 = vmatpush1.msra.mxu0 %v380
    %680 = vmatprep.subr.mxu0 0.0
    %681 = vmatpush1.msra.mxu0 %v386
    %682 = vmatprep.subr.mxu0 0.0
    %683 = vmatpush1.msra.mxu0 %v392
    %684 = vmatprep.mubr.f32.mxu0 %v30
    %685 = vmatmul.mubr.f32.gmra.mrb[0].mxu0 %v29
    %v686 = vpop.f32.mrb[0].mxu0
    %v687 = vadd.f32 0.0, %v686
    %v688 = vpop.f32.mrb[0].mxu0
    %689 = vmatprep.mubr.f32.mxu0 %v33
    %690 = vmatmul.mubr.f32.gmra.mrb[0].mxu0 %v32
    %v691 = vpop.f32.mrb[0].mxu0
    %v692 = vadd.f32 0.0, %v691
    %v693 = vpop.f32.mrb[0].mxu0
    %694 = vdwg.mxu0
    %695 = vmatprep.subr.mxu0 0.0
    %696 = vmatpush1.msra.mxu0 %v419
    %697 = vmatprep.subr.mxu0 0.0
    %698 = vmatpush1.msra.mxu0 %v425
    %699 = vmatprep.subr.mxu0 0.0
    %700 = vmatpush1.msra.mxu0 %v431
    %701 = vmatprep.subr.mxu0 0.0
    %702 = vmatpush1.msra.mxu0 %v437
    %703 = vmatprep.subr.mxu0 0.0
    %704 = vmatpush1.msra.mxu0 0.0
    %705 = vmatprep.subr.mxu0 0.0
    %706 = vmatpush1.msra.mxu0 0.0
    %707 = vmatprep.subr.mxu0 0.0
    %708 = vmatpush1.msra.mxu0 0.0
    %709 = vmatprep.subr.mxu0 0.0
    %710 = vmatpush1.msra.mxu0 0.0
    %711 = vmatprep.subr.mxu0 0.0
    %712 = vmatpush1.msra.mxu0 0.0
    %713 = vmatprep.subr.mxu0 0.0
    %714 = vmatpush1.msra.mxu0 0.0
    %715 = vmatprep.subr.mxu0 0.0
    %716 = vmatpush1.msra.mxu0 0.0
    %717 = vmatprep.subr.mxu0 0.0
    %718 = vmatpush1.msra.mxu0 0.0
    %719 = vmatprep.subr.mxu0 0.0
    %720 = vmatpush1.msra.mxu0 0.0
    %721 = vmatprep.subr.mxu0 0.0
    %722 = vmatpush1.msra.mxu0 0.0
    %723 = vmatprep.subr.mxu0 0.0
    %724 = vmatpush1.msra.mxu0 0.0
    %725 = vmatprep.subr.mxu0 0.0
    %726 = vmatpush1.msra.mxu0 0.0
    %727 = vmatprep.subr.mxu0 0.0
    %728 = vmatpush1.msra.mxu0 0.0
    %729 = vmatprep.subr.mxu0 0.0
    %730 = vmatpush1.msra.mxu0 0.0
    %731 = vmatprep.subr.mxu0 0.0
    %732 = vmatpush1.msra.mxu0 0.0
    %733 = vmatprep.subr.mxu0 0.0
    %734 = vmatpush1.msra.mxu0 0.0
    %735 = vmatprep.subr.mxu0 0.0
    %736 = vmatpush1.msra.mxu0 0.0
    %737 = vmatprep.subr.mxu0 0.0
    %738 = vmatpush1.msra.mxu0 0.0
    %739 = vmatprep.subr.mxu0 0.0
    %740 = vmatpush1.msra.mxu0 0.0
    %741 = vmatprep.subr.mxu0 0.0
    %742 = vmatpush1.msra.mxu0 0.0
    %743 = vmatprep.subr.mxu0 0.0
    %744 = vmatpush1.msra.mxu0 0.0
    %745 = vmatprep.subr.mxu0 0.0
    %746 = vmatpush1.msra.mxu0 0.0
    %747 = vmatprep.subr.mxu0 0.0
    %748 = vmatpush1.msra.mxu0 0.0
    %749 = vmatprep.subr.mxu0 0.0
    %750 = vmatpush1.msra.mxu0 0.0
    %751 = vmatprep.subr.mxu0 0.0
    %752 = vmatpush1.msra.mxu0 0.0
    %753 = vmatprep.subr.mxu0 0.0
    %754 = vmatpush1.msra.mxu0 0.0
    %755 = vmatprep.subr.mxu0 0.0
    %756 = vmatpush1.msra.mxu0 0.0
    %757 = vmatprep.subr.mxu0 0.0
    %758 = vmatpush1.msra.mxu0 0.0
    %759 = vmatprep.mubr.f32.mxu0 0.0
    %760 = vmatmul.mubr.f32.gmra.mrb[0].mxu0 %v461
    %v761 = vpop.f32.mrb[0].mxu0
    %v762 = vadd.f32 %v687, %v761
    %v763 = vpop.f32.mrb[0].mxu0
    %764 = vmatprep.mubr.f32.mxu0 0.0
    %765 = vmatmul.mubr.f32.gmra.mrb[0].mxu0 %v464
    %v766 = vpop.f32.mrb[0].mxu0
    %v767 = vadd.f32 %v692, %v766
    %v768 = vpop.f32.mrb[0].mxu0
    %769 = vdwg.mxu0
    %v770 = vmax.f32 %v610, 0.0
    %v771 = vmax.f32 %v612, 0.0
    %v772 = vmax.f32 %v762, 0.0
    %v773 = vmax.f32 %v616, 0.0
    %v774 = vmax.f32 %v618, 0.0
    %v775 = vmax.f32 %v767, 0.0
    %vm776 = vcmask 130048
    %v778 = vsel %vm776, %v35, 0
    %v781 = vsel %vm776, %v36, 0
    %v784 = vsel %vm776, %v37, 0
    %v787 = vsel %vm776, %v38, 0
    %789 = vmatprep.subr.mxu0 %v771
    %790 = vmatpush1.msra.mxu0 %v770
    %791 = vmatprep.subr.mxu0 %v774
    %792 = vmatpush1.msra.mxu0 %v773
    %793 = vmatprep.subr.mxu0 0.0
    %794 = vmatpush1.msra.mxu0 0.0
    %795 = vmatprep.subr.mxu0 0.0
    %796 = vmatpush1.msra.mxu0 0.0
    %797 = vmatprep.subr.mxu0 0.0
    %798 = vmatpush1.msra.mxu0 0.0
    %799 = vmatprep.subr.mxu0 0.0
    %800 = vmatpush1.msra.mxu0 0.0
    %801 = vmatprep.subr.mxu0 0.0
    %802 = vmatpush1.msra.mxu0 0.0
    %803 = vmatprep.subr.mxu0 0.0
    %804 = vmatpush1.msra.mxu0 0.0
    %805 = vmatprep.subr.mxu0 0.0
    %806 = vmatpush1.msra.mxu0 0.0
    %807 = vmatprep.subr.mxu0 0.0
    %808 = vmatpush1.msra.mxu0 0.0
    %809 = vmatprep.subr.mxu0 0.0
    %810 = vmatpush1.msra.mxu0 0.0
    %811 = vmatprep.subr.mxu0 0.0
    %812 = vmatpush1.msra.mxu0 0.0
    %813 = vmatprep.subr.mxu0 0.0
    %814 = vmatpush1.msra.mxu0 0.0
    %815 = vmatprep.subr.mxu0 0.0
    %816 = vmatpush1.msra.mxu0 0.0
    %817 = vmatprep.subr.mxu0 0.0
    %818 = vmatpush1.msra.mxu0 0.0
    %819 = vmatprep.subr.mxu0 0.0
    %820 = vmatpush1.msra.mxu0 0.0
    %821 = vmatprep.subr.mxu0 0.0
    %822 = vmatpush1.msra.mxu0 0.0
    %823 = vmatprep.subr.mxu0 0.0
    %824 = vmatpush1.msra.mxu0 0.0
    %825 = vmatprep.subr.mxu0 0.0
    %826 = vmatpush1.msra.mxu0 0.0
    %827 = vmatprep.subr.mxu0 0.0
    %828 = vmatpush1.msra.mxu0 0.0
    %829 = vmatprep.subr.mxu0 0.0
    %830 = vmatpush1.msra.mxu0 0.0
    %831 = vmatprep.subr.mxu0 0.0
    %832 = vmatpush1.msra.mxu0 0.0
    %833 = vmatprep.subr.mxu0 0.0
    %834 = vmatpush1.msra.mxu0 0.0
    %835 = vmatprep.subr.mxu0 0.0
    %836 = vmatpush1.msra.mxu0 0.0
    %837 = vmatprep.subr.mxu0 0.0
    %838 = vmatpush1.msra.mxu0 0.0
    %839 = vmatprep.subr.mxu0 0.0
    %840 = vmatpush1.msra.mxu0 0.0
    %841 = vmatprep.subr.mxu0 0.0
    %842 = vmatpush1.msra.mxu0 0.0
    %843 = vmatprep.subr.mxu0 0.0
    %844 = vmatpush1.msra.mxu0 0.0
    %845 = vmatprep.subr.mxu0 0.0
    %846 = vmatpush1.msra.mxu0 0.0
    %847 = vmatprep.subr.mxu0 0.0
    %848 = vmatpush1.msra.mxu0 0.0
    %849 = vmatprep.subr.mxu0 0.0
    %850 = vmatpush1.msra.mxu0 0.0
    %851 = vmatprep.subr.mxu0 0.0
    %852 = vmatpush1.msra.mxu0 0.0
    %853 = vmatprep.mubr.f32.mxu0 0.0
    %854 = vmatmul.mubr.f32.gmra.mrb[0].mxu0 %v778
    %v855 = vpop.f32.mrb[0].mxu0
    %v856 = vadd.f32 0.0, %v855
    %v857 = vpop.f32.mrb[0].mxu0
    %v858 = vadd.f32 0.0, %v857
    %859 = vmatprep.mubr.f32.mxu0 0.0
    %860 = vmatmul.mubr.f32.gmra.mrb[0].mxu0 %v781
    %v861 = vpop.f32.mrb[0].mxu0
    %v862 = vadd.f32 0.0, %v861
    %v863 = vpop.f32.mrb[0].mxu0
    %v864 = vadd.f32 0.0, %v863
    %865 = vmatprep.mubr.f32.mxu0 0.0
    %866 = vmatmul.mubr.f32.gmra.mrb[0].mxu0 %v784
    %v867 = vpop.f32.mrb[0].mxu0
    %v868 = vadd.f32 0.0, %v867
    %v869 = vpop.f32.mrb[0].mxu0
    %v870 = vadd.f32 0.0, %v869
    %871 = vmatprep.mubr.f32.mxu0 0.0
    %872 = vmatmul.mubr.f32.gmra.mrb[0].mxu0 %v787
    %v873 = vpop.f32.mrb[0].mxu0
    %v874 = vadd.f32 0.0, %v873
    %v875 = vpop.f32.mrb[0].mxu0
    %v876 = vadd.f32 0.0, %v875
    %877 = vdwg.mxu0
    %878 = vmatprep.subr.mxu0 0.0
    %879 = vmatpush1.msra.mxu0 %v772
    %880 = vmatprep.subr.mxu0 0.0
    %881 = vmatpush1.msra.mxu0 %v775
    %882 = vmatprep.subr.mxu0 0.0
    %883 = vmatpush1.msra.mxu0 0.0
    %884 = vmatprep.subr.mxu0 0.0
    %885 = vmatpush1.msra.mxu0 0.0
    %886 = vmatprep.subr.mxu0 0.0
    %887 = vmatpush1.msra.mxu0 0.0
    %888 = vmatprep.subr.mxu0 0.0
    %889 = vmatpush1.msra.mxu0 0.0
    %890 = vmatprep.subr.mxu0 0.0
    %891 = vmatpush1.msra.mxu0 0.0
    %892 = vmatprep.subr.mxu0 0.0
    %893 = vmatpush1.msra.mxu0 0.0
    %894 = vmatprep.subr.mxu0 0.0
    %895 = vmatpush1.msra.mxu0 0.0
    %896 = vmatprep.subr.mxu0 0.0
    %897 = vmatpush1.msra.mxu0 0.0
    %898 = vmatprep.subr.mxu0 0.0
    %899 = vmatpush1.msra.mxu0 0.0
    %900 = vmatprep.subr.mxu0 0.0
    %901 = vmatpush1.msra.mxu0 0.0
    %902 = vmatprep.subr.mxu0 0.0
    %903 = vmatpush1.msra.mxu0 0.0
    %904 = vmatprep.subr.mxu0 0.0
    %905 = vmatpush1.msra.mxu0 0.0
    %906 = vmatprep.subr.mxu0 0.0
    %907 = vmatpush1.msra.mxu0 0.0
    %908 = vmatprep.subr.mxu0 0.0
    %909 = vmatpush1.msra.mxu0 0.0
    %910 = vmatprep.subr.mxu0 0.0
    %911 = vmatpush1.msra.mxu0 0.0
    %912 = vmatprep.subr.mxu0 0.0
    %913 = vmatpush1.msra.mxu0 0.0
    %914 = vmatprep.subr.mxu0 0.0
    %915 = vmatpush1.msra.mxu0 0.0
    %916 = vmatprep.subr.mxu0 0.0
    %917 = vmatpush1.msra.mxu0 0.0
    %918 = vmatprep.subr.mxu0 0.0
    %919 = vmatpush1.msra.mxu0 0.0
    %920 = vmatprep.subr.mxu0 0.0
    %921 = vmatpush1.msra.mxu0 0.0
    %922 = vmatprep.subr.mxu0 0.0
    %923 = vmatpush1.msra.mxu0 0.0
    %924 = vmatprep.subr.mxu0 0.0
    %925 = vmatpush1.msra.mxu0 0.0
    %926 = vmatprep.subr.mxu0 0.0
    %927 = vmatpush1.msra.mxu0 0.0
    %928 = vmatprep.subr.mxu0 0.0
    %929 = vmatpush1.msra.mxu0 0.0
    %930 = vmatprep.subr.mxu0 0.0
    %931 = vmatpush1.msra.mxu0 0.0
    %932 = vmatprep.subr.mxu0 0.0
    %933 = vmatpush1.msra.mxu0 0.0
    %934 = vmatprep.subr.mxu0 0.0
    %935 = vmatpush1.msra.mxu0 0.0
    %936 = vmatprep.subr.mxu0 0.0
    %937 = vmatpush1.msra.mxu0 0.0
    %938 = vmatprep.subr.mxu0 0.0
    %939 = vmatpush1.msra.mxu0 0.0
    %940 = vmatprep.subr.mxu0 0.0
    %941 = vmatpush1.msra.mxu0 0.0
    %942 = vmatprep.mubr.f32.mxu0 0.0
    %943 = vmatmul.mubr.f32.gmra.mrb[0].mxu0 %v778
    %v944 = vpop.f32.mrb[0].mxu0
    %v945 = vadd.f32 0.0, %v944
    %v946 = vpop.f32.mrb[0].mxu0
    %947 = vmatprep.mubr.f32.mxu0 0.0
    %948 = vmatmul.mubr.f32.gmra.mrb[0].mxu0 %v781
    %v949 = vpop.f32.mrb[0].mxu0
    %v950 = vadd.f32 0.0, %v949
    %v951 = vpop.f32.mrb[0].mxu0
    %952 = vmatprep.mubr.f32.mxu0 0.0
    %953 = vmatmul.mubr.f32.gmra.mrb[0].mxu0 %v784
    %v954 = vpop.f32.mrb[0].mxu0
    %v955 = vadd.f32 0.0, %v954
    %v956 = vpop.f32.mrb[0].mxu0
    %957 = vmatprep.mubr.f32.mxu0 0.0
    %958 = vmatmul.mubr.f32.gmra.mrb[0].mxu0 %v787
    %v959 = vpop.f32.mrb[0].mxu0
    %v960 = vadd.f32 0.0, %v959
    %v961 = vpop.f32.mrb[0].mxu0
    %962 = vdwg.mxu0
    %975 = vrot.lane.b32.xlu0 %v856, 19
    %v976 = vpop.permute.xlu0 %975
    %977 = vrot.lane.b32.xlu0 %v858, 19
    %v978 = vpop.permute.xlu0 %977
    %979 = vrot.lane.b32.xlu0 %v945, 19
    %v980 = vpop.permute.xlu0 %979
    %981 = vrot.lane.b32.xlu0 %v862, 19
    %v982 = vpop.permute.xlu0 %981
    %983 = vrot.lane.b32.xlu0 %v864, 19
    %v984 = vpop.permute.xlu0 %983
    %985 = vrot.lane.b32.xlu0 %v950, 19
    %v986 = vpop.permute.xlu0 %985
    %987 = vrot.lane.b32.xlu0 %v868, 19
    %v988 = vpop.permute.xlu0 %987
    %989 = vrot.lane.b32.xlu0 %v870, 19
    %v990 = vpop.permute.xlu0 %989
    %991 = vrot.lane.b32.xlu0 %v955, 19
    %v992 = vpop.permute.xlu0 %991
    %993 = vrot.lane.b32.xlu0 %v874, 19
    %v994 = vpop.permute.xlu0 %993
    %995 = vrot.lane.b32.xlu0 %v876, 19
    %v996 = vpop.permute.xlu0 %995
    %997 = vrot.lane.b32.xlu0 %v960, 19
    %v998 = vpop.permute.xlu0 %997
    %vm999 = vcmask 154624
    %v1000 = vsel %vm999, %v976, %v978
    %v1001 = vsel %vm999, %v978, %v980
    %v1002 = vsel %vm999, %v982, %v984
    %v1003 = vsel %vm999, %v984, %v986
    %v1004 = vsel %vm999, %v988, %v990
    %v1005 = vsel %vm999, %v990, %v992
    %v1006 = vsel %vm999, %v994, %v996
    %v1007 = vsel %vm999, %v996, %v998
    %v1020 = vadd.f32 %v39, %v976
    %v1021 = vadd.f32 %v40, %v1000
    %v1022 = vadd.f32 %v41, %v1001
    %v1023 = vadd.f32 %v42, %v982
    %v1024 = vadd.f32 %v43, %v1002
    %v1025 = vadd.f32 %v44, %v1003
    %v1026 = vadd.f32 %v45, %v988
    %v1027 = vadd.f32 %v46, %v1004
    %v1028 = vadd.f32 %v47, %v1005
    %v1029 = vadd.f32 %v48, %v994
    %v1030 = vadd.f32 %v49, %v1006
    %v1031 = vadd.f32 %v50, %v1007
    %1044 = vrot.lane.b32.xlu0 %v1020, 109
    %v1045 = vpop.permute.xlu0 %1044
    %1046 = vrot.lane.b32.xlu0 %v1021, 109
    %v1047 = vpop.permute.xlu0 %1046
    %1048 = vrot.lane.b32.xlu0 %v1022, 109
    %v1049 = vpop.permute.xlu0 %1048
    %1050 = vrot.lane.b32.xlu0 %v1023, 109
    %v1051 = vpop.permute.xlu0 %1050
    %1052 = vrot.lane.b32.xlu0 %v1024, 109
    %v1053 = vpop.permute.xlu0 %1052
    %1054 = vrot.lane.b32.xlu0 %v1025, 109
    %v1055 = vpop.permute.xlu0 %1054
    %1056 = vrot.lane.b32.xlu0 %v1026, 109
    %v1057 = vpop.permute.xlu0 %1056
    %1058 = vrot.lane.b32.xlu0 %v1027, 109
    %v1059 = vpop.permute.xlu0 %1058
    %1060 = vrot.lane.b32.xlu0 %v1028, 109
    %v1061 = vpop.permute.xlu0 %1060
    %1062 = vrot.lane.b32.xlu0 %v1029, 109
    %v1063 = vpop.permute.xlu0 %1062
    %1064 = vrot.lane.b32.xlu0 %v1030, 109
    %v1065 = vpop.permute.xlu0 %1064
    %1066 = vrot.lane.b32.xlu0 %v1031, 109
    %v1067 = vpop.permute.xlu0 %1066
    %v1068 = vsel %vm258, %v1045, %v1047
    %v1069 = vsel %vm258, %v1047, %v1049
    %v1070 = vsel %vm258, %v1051, %v1053
    %v1071 = vsel %vm258, %v1053, %v1055
    %v1072 = vsel %vm258, %v1057, %v1059
    %v1073 = vsel %vm258, %v1059, %v1061
    %v1074 = vsel %vm258, %v1063, %v1065
    %v1075 = vsel %vm258, %v1065, %v1067
    %1088 = vst [vmem:[#allocation5] sm:$0xff] %v1068
    %1089 = vst [vmem:[#allocation5 + $0x8] sm:$0xff] %v1069
    %vm1090 = vcmask 244736
    %1091 = vst.msk [vmem:[#allocation5 + $0x10] sm:$0xff] %vm1090, %v1049
    %1092 = vst [vmem:[#allocation5 + $0x18] sm:$0xff] %v1070
    %1093 = vst [vmem:[#allocation5 + $0x20] sm:$0xff] %v1071
    %1094 = vst.msk [vmem:[#allocation5 + $0x28] sm:$0xff] %vm1090, %v1055
    %1095 = vst [vmem:[#allocation5 + $0x30] sm:$0xff] %v1072
    %1096 = vst [vmem:[#allocation5 + $0x38] sm:$0xff] %v1073
    %1097 = vst.msk [vmem:[#allocation5 + $0x40] sm:$0xff] %vm1090, %v1061
    %1098 = vst [vmem:[#allocation5 + $0x48] sm:$0xff] %v1074
    %1099 = vst [vmem:[#allocation5 + $0x50] sm:$0xff] %v1075
    %1100 = vst.msk [vmem:[#allocation5 + $0x58] sm:$0xff] %vm1090, %v1067
    %1113 = vrot.lane.b32.xlu0 %v75, 127
    %v1114 = vpop.permute.xlu0 %1113
    %1115 = vrot.lane.b32.xlu0 %v76, 127
    %v1116 = vpop.permute.xlu0 %1115
    %1117 = vrot.lane.b32.xlu0 %v77, 127
    %v1118 = vpop.permute.xlu0 %1117
    %1119 = vrot.lane.b32.xlu0 %v78, 127
    %v1120 = vpop.permute.xlu0 %1119
    %1121 = vrot.lane.b32.xlu0 %v79, 127
    %v1122 = vpop.permute.xlu0 %1121
    %1123 = vrot.lane.b32.xlu0 %v80, 127
    %v1124 = vpop.permute.xlu0 %1123
    %1125 = vrot.lane.b32.xlu0 %v81, 127
    %v1126 = vpop.permute.xlu0 %1125
    %1127 = vrot.lane.b32.xlu0 %v82, 127
    %v1128 = vpop.permute.xlu0 %1127
    %1129 = vrot.lane.b32.xlu0 %v83, 127
    %v1130 = vpop.permute.xlu0 %1129
    %1131 = vrot.lane.b32.xlu0 %v84, 127
    %v1132 = vpop.permute.xlu0 %1131
    %1133 = vrot.lane.b32.xlu0 %v85, 127
    %v1134 = vpop.permute.xlu0 %1133
    %1135 = vrot.lane.b32.xlu0 %v86, 127
    %v1136 = vpop.permute.xlu0 %1135
    %v1137 = vsel %vm123, %v1114, %v1116
    %v1138 = vsel %vm123, %v1116, %v1118
    %v1139 = vsel %vm123, %v1120, %v1122
    %v1140 = vsel %vm123, %v1122, %v1124
    %v1141 = vsel %vm123, %v1126, %v1128
    %v1142 = vsel %vm123, %v1128, %v1130
    %v1143 = vsel %vm123, %v1132, %v1134
    %v1144 = vsel %vm123, %v1134, %v1136
    %1157 = vrot.lane.b32.xlu0 %v75, 126
    %v1158 = vpop.permute.xlu0 %1157
    %1159 = vrot.lane.b32.xlu0 %v76, 126
    %v1160 = vpop.permute.xlu0 %1159
    %1161 = vrot.lane.b32.xlu0 %v77, 126
    %v1162 = vpop.permute.xlu0 %1161
    %1163 = vrot.lane.b32.xlu0 %v78, 126
    %v1164 = vpop.permute.xlu0 %1163
    %1165 = vrot.lane.b32.xlu0 %v79, 126
    %v1166 = vpop.permute.xlu0 %1165
    %1167 = vrot.lane.b32.xlu0 %v80, 126
    %v1168 = vpop.permute.xlu0 %1167
    %1169 = vrot.lane.b32.xlu0 %v81, 126
    %v1170 = vpop.permute.xlu0 %1169
    %1171 = vrot.lane.b32.xlu0 %v82, 126
    %v1172 = vpop.permute.xlu0 %1171
    %1173 = vrot.lane.b32.xlu0 %v83, 126
    %v1174 = vpop.permute.xlu0 %1173
    %1175 = vrot.lane.b32.xlu0 %v84, 126
    %v1176 = vpop.permute.xlu0 %1175
    %1177 = vrot.lane.b32.xlu0 %v85, 126
    %v1178 = vpop.permute.xlu0 %1177
    %1179 = vrot.lane.b32.xlu0 %v86, 126
    %v1180 = vpop.permute.xlu0 %1179
    %v1181 = vsel %vm168, %v1158, %v1160
    %v1182 = vsel %vm168, %v1160, %v1162
    %v1183 = vsel %vm168, %v1164, %v1166
    %v1184 = vsel %vm168, %v1166, %v1168
    %v1185 = vsel %vm168, %v1170, %v1172
    %v1186 = vsel %vm168, %v1172, %v1174
    %v1187 = vsel %vm168, %v1176, %v1178
    %v1188 = vsel %vm168, %v1178, %v1180
    %1201 = vrot.lane.b32.xlu0 %v75, 110
    %v1202 = vpop.permute.xlu0 %1201
    %1203 = vrot.lane.b32.xlu0 %v76, 110
    %v1204 = vpop.permute.xlu0 %1203
    %1205 = vrot.lane.b32.xlu0 %v77, 110
    %v1206 = vpop.permute.xlu0 %1205
    %1207 = vrot.lane.b32.xlu0 %v78, 110
    %v1208 = vpop.permute.xlu0 %1207
    %1209 = vrot.lane.b32.xlu0 %v79, 110
    %v1210 = vpop.permute.xlu0 %1209
    %1211 = vrot.lane.b32.xlu0 %v80, 110
    %v1212 = vpop.permute.xlu0 %1211
    %1213 = vrot.lane.b32.xlu0 %v81, 110
    %v1214 = vpop.permute.xlu0 %1213
    %1215 = vrot.lane.b32.xlu0 %v82, 110
    %v1216 = vpop.permute.xlu0 %1215
    %1217 = vrot.lane.b32.xlu0 %v83, 110
    %v1218 = vpop.permute.xlu0 %1217
    %1219 = vrot.lane.b32.xlu0 %v84, 110
    %v1220 = vpop.permute.xlu0 %1219
    %1221 = vrot.lane.b32.xlu0 %v85, 110
    %v1222 = vpop.permute.xlu0 %1221
    %1223 = vrot.lane.b32.xlu0 %v86, 110
    %v1224 = vpop.permute.xlu0 %1223
    %v1225 = vsel %vm213, %v1202, %v1204
    %v1226 = vsel %vm213, %v1204, %v1206
    %v1227 = vsel %vm213, %v1208, %v1210
    %v1228 = vsel %vm213, %v1210, %v1212
    %v1229 = vsel %vm213, %v1214, %v1216
    %v1230 = vsel %vm213, %v1216, %v1218
    %v1231 = vsel %vm213, %v1220, %v1222
    %v1232 = vsel %vm213, %v1222, %v1224
    %1245 = vrot.lane.b32.xlu0 %v75, 109
    %v1246 = vpop.permute.xlu0 %1245
    %1247 = vrot.lane.b32.xlu0 %v76, 109
    %v1248 = vpop.permute.xlu0 %1247
    %1249 = vrot.lane.b32.xlu0 %v77, 109
    %v1250 = vpop.permute.xlu0 %1249
    %1251 = vrot.lane.b32.xlu0 %v78, 109
    %v1252 = vpop.permute.xlu0 %1251
    %1253 = vrot.lane.b32.xlu0 %v79, 109
    %v1254 = vpop.permute.xlu0 %1253
    %1255 = vrot.lane.b32.xlu0 %v80, 109
    %v1256 = vpop.permute.xlu0 %1255
    %1257 = vrot.lane.b32.xlu0 %v81, 109
    %v1258 = vpop.permute.xlu0 %1257
    %1259 = vrot.lane.b32.xlu0 %v82, 109
    %v1260 = vpop.permute.xlu0 %1259
    %1261 = vrot.lane.b32.xlu0 %v83, 109
    %v1262 = vpop.permute.xlu0 %1261
    %1263 = vrot.lane.b32.xlu0 %v84, 109
    %v1264 = vpop.permute.xlu0 %1263
    %1265 = vrot.lane.b32.xlu0 %v85, 109
    %v1266 = vpop.permute.xlu0 %1265
    %1267 = vrot.lane.b32.xlu0 %v86, 109
    %v1268 = vpop.permute.xlu0 %1267
    %v1269 = vsel %vm258, %v1246, %v1248
    %v1270 = vsel %vm258, %v1248, %v1250
    %v1271 = vsel %vm258, %v1252, %v1254
    %v1272 = vsel %vm258, %v1254, %v1256
    %v1273 = vsel %vm258, %v1258, %v1260
    %v1274 = vsel %vm258, %v1260, %v1262
    %v1275 = vsel %vm258, %v1264, %v1266
    %v1276 = vsel %vm258, %v1266, %v1268
    %1289 = vrot.lane.b32.xlu0 %v75, 108
    %v1290 = vpop.permute.xlu0 %1289
    %1291 = vrot.lane.b32.xlu0 %v76, 108
    %v1292 = vpop.permute.xlu0 %1291
    %1293 = vrot.lane.b32.xlu0 %v77, 108
    %v1294 = vpop.permute.xlu0 %1293
    %1295 = vrot.lane.b32.xlu0 %v78, 108
    %v1296 = vpop.permute.xlu0 %1295
    %1297 = vrot.lane.b32.xlu0 %v79, 108
    %v1298 = vpop.permute.xlu0 %1297
    %1299 = vrot.lane.b32.xlu0 %v80, 108
    %v1300 = vpop.permute.xlu0 %1299
    %1301 = vrot.lane.b32.xlu0 %v81, 108
    %v1302 = vpop.permute.xlu0 %1301
    %1303 = vrot.lane.b32.xlu0 %v82, 108
    %v1304 = vpop.permute.xlu0 %1303
    %1305 = vrot.lane.b32.xlu0 %v83, 108
    %v1306 = vpop.permute.xlu0 %1305
    %1307 = vrot.lane.b32.xlu0 %v84, 108
    %v1308 = vpop.permute.xlu0 %1307
    %1309 = vrot.lane.b32.xlu0 %v85, 108
    %v1310 = vpop.permute.xlu0 %1309
    %1311 = vrot.lane.b32.xlu0 %v86, 108
    %v1312 = vpop.permute.xlu0 %1311
    %v1313 = vsel %vm303, %v1290, %v1292
    %v1314 = vsel %vm303, %v1292, %v1294
    %v1315 = vsel %vm303, %v1296, %v1298
    %v1316 = vsel %vm303, %v1298, %v1300
    %v1317 = vsel %vm303, %v1302, %v1304
    %v1318 = vsel %vm303, %v1304, %v1306
    %v1319 = vsel %vm303, %v1308, %v1310
    %v1320 = vsel %vm303, %v1310, %v1312
    %1333 = vrot.lane.b32.xlu0 %v75, 92
    %v1334 = vpop.permute.xlu0 %1333
    %1335 = vrot.lane.b32.xlu0 %v76, 92
    %v1336 = vpop.permute.xlu0 %1335
    %1337 = vrot.lane.b32.xlu0 %v77, 92
    %v1338 = vpop.permute.xlu0 %1337
    %1339 = vrot.lane.b32.xlu0 %v78, 92
    %v1340 = vpop.permute.xlu0 %1339
    %1341 = vrot.lane.b32.xlu0 %v79, 92
    %v1342 = vpop.permute.xlu0 %1341
    %1343 = vrot.lane.b32.xlu0 %v80, 92
    %v1344 = vpop.permute.xlu0 %1343
    %1345 = vrot.lane.b32.xlu0 %v81, 92
    %v1346 = vpop.permute.xlu0 %1345
    %1347 = vrot.lane.b32.xlu0 %v82, 92
    %v1348 = vpop.permute.xlu0 %1347
    %1349 = vrot.lane.b32.xlu0 %v83, 92
    %v1350 = vpop.permute.xlu0 %1349
    %1351 = vrot.lane.b32.xlu0 %v84, 92
    %v1352 = vpop.permute.xlu0 %1351
    %1353 = vrot.lane.b32.xlu0 %v85, 92
    %v1354 = vpop.permute.xlu0 %1353
    %1355 = vrot.lane.b32.xlu0 %v86, 92
    %v1356 = vpop.permute.xlu0 %1355
    %v1357 = vsel %vm348, %v1334, %v1336
    %v1358 = vsel %vm348, %v1336, %v1338
    %v1359 = vsel %vm348, %v1340, %v1342
    %v1360 = vsel %vm348, %v1342, %v1344
    %v1361 = vsel %vm348, %v1346, %v1348
    %v1362 = vsel %vm348, %v1348, %v1350
    %v1363 = vsel %vm348, %v1352, %v1354
    %v1364 = vsel %vm348, %v1354, %v1356
    %1377 = vrot.lane.b32.xlu0 %v75, 91
    %v1378 = vpop.permute.xlu0 %1377
    %1379 = vrot.lane.b32.xlu0 %v76, 91
    %v1380 = vpop.permute.xlu0 %1379
    %1381 = vrot.lane.b32.xlu0 %v77, 91
    %v1382 = vpop.permute.xlu0 %1381
    %1383 = vrot.lane.b32.xlu0 %v78, 91
    %v1384 = vpop.permute.xlu0 %1383
    %1385 = vrot.lane.b32.xlu0 %v79, 91
    %v1386 = vpop.permute.xlu0 %1385
    %1387 = vrot.lane.b32.xlu0 %v80, 91
    %v1388 = vpop.permute.xlu0 %1387
    %1389 = vrot.lane.b32.xlu0 %v81, 91
    %v1390 = vpop.permute.xlu0 %1389
    %1391 = vrot.lane.b32.xlu0 %v82, 91
    %v1392 = vpop.permute.xlu0 %1391
    %1393 = vrot.lane.b32.xlu0 %v83, 91
    %v1394 = vpop.permute.xlu0 %1393
    %1395 = vrot.lane.b32.xlu0 %v84, 91
    %v1396 = vpop.permute.xlu0 %1395
    %1397 = vrot.lane.b32.xlu0 %v85, 91
    %v1398 = vpop.permute.xlu0 %1397
    %1399 = vrot.lane.b32.xlu0 %v86, 91
    %v1400 = vpop.permute.xlu0 %1399
    %v1401 = vsel %vm393, %v1378, %v1380
    %v1402 = vsel %vm393, %v1380, %v1382
    %v1403 = vsel %vm393, %v1384, %v1386
    %v1404 = vsel %vm393, %v1386, %v1388
    %v1405 = vsel %vm393, %v1390, %v1392
    %v1406 = vsel %vm393, %v1392, %v1394
    %v1407 = vsel %vm393, %v1396, %v1398
    %v1408 = vsel %vm393, %v1398, %v1400
    %1421 = vrot.lane.b32.xlu0 %v75, 90
    %v1422 = vpop.permute.xlu0 %1421
    %1423 = vrot.lane.b32.xlu0 %v76, 90
    %v1424 = vpop.permute.xlu0 %1423
    %1425 = vrot.lane.b32.xlu0 %v77, 90
    %v1426 = vpop.permute.xlu0 %1425
    %1427 = vrot.lane.b32.xlu0 %v78, 90
    %v1428 = vpop.permute.xlu0 %1427
    %1429 = vrot.lane.b32.xlu0 %v79, 90
    %v1430 = vpop.permute.xlu0 %1429
    %1431 = vrot.lane.b32.xlu0 %v80, 90
    %v1432 = vpop.permute.xlu0 %1431
    %1433 = vrot.lane.b32.xlu0 %v81, 90
    %v1434 = vpop.permute.xlu0 %1433
    %1435 = vrot.lane.b32.xlu0 %v82, 90
    %v1436 = vpop.permute.xlu0 %1435
    %1437 = vrot.lane.b32.xlu0 %v83, 90
    %v1438 = vpop.permute.xlu0 %1437
    %1439 = vrot.lane.b32.xlu0 %v84, 90
    %v1440 = vpop.permute.xlu0 %1439
    %1441 = vrot.lane.b32.xlu0 %v85, 90
    %v1442 = vpop.permute.xlu0 %1441
    %1443 = vrot.lane.b32.xlu0 %v86, 90
    %v1444 = vpop.permute.xlu0 %1443
    %v1445 = vsel %vm438, %v1422, %v1424
    %v1446 = vsel %vm438, %v1424, %v1426
    %v1447 = vsel %vm438, %v1428, %v1430
    %v1448 = vsel %vm438, %v1430, %v1432
    %v1449 = vsel %vm438, %v1434, %v1436
    %v1450 = vsel %vm438, %v1436, %v1438
    %v1451 = vsel %vm438, %v1440, %v1442
    %v1452 = vsel %vm438, %v1442, %v1444
    %1465 = vmatprep.subr.mxu0 %v76
    %1466 = vmatpush1.msra.mxu0 %v75
    %1467 = vmatprep.subr.mxu0 %v79
    %1468 = vmatpush1.msra.mxu0 %v78
    %1469 = vmatprep.subr.mxu0 %v82
    %1470 = vmatpush1.msra.mxu0 %v81
    %1471 = vmatprep.subr.mxu0 %v85
    %1472 = vmatpush1.msra.mxu0 %v84
    %1473 = vmatprep.subr.mxu0 %v1138
    %1474 = vmatpush1.msra.mxu0 %v1137
    %1475 = vmatprep.subr.mxu0 %v1140
    %1476 = vmatpush1.msra.mxu0 %v1139
    %1477 = vmatprep.subr.mxu0 %v1142
    %1478 = vmatpush1.msra.mxu0 %v1141
    %1479 = vmatprep.subr.mxu0 %v1144
    %1480 = vmatpush1.msra.mxu0 %v1143
    %1481 = vmatprep.subr.mxu0 %v1182
    %1482 = vmatpush1.msra.mxu0 %v1181
    %1483 = vmatprep.subr.mxu0 %v1184
    %1484 = vmatpush1.msra.mxu0 %v1183
    %1485 = vmatprep.subr.mxu0 %v1186
    %1486 = vmatpush1.msra.mxu0 %v1185
    %1487 = vmatprep.subr.mxu0 %v1188
    %1488 = vmatpush1.msra.mxu0 %v1187
    %1489 = vmatprep.subr.mxu0 %v1226
    %1490 = vmatpush1.msra.mxu0 %v1225
    %1491 = vmatprep.subr.mxu0 %v1228
    %1492 = vmatpush1.msra.mxu0 %v1227
    %1493 = vmatprep.subr.mxu0 %v1230
    %1494 = vmatpush1.msra.mxu0 %v1229
    %1495 = vmatprep.subr.mxu0 %v1232
    %1496 = vmatpush1.msra.mxu0 %v1231
    %1497 = vmatprep.subr.mxu0 %v1270
    %1498 = vmatpush1.msra.mxu0 %v1269
    %1499 = vmatprep.subr.mxu0 %v1272
    %1500 = vmatpush1.msra.mxu0 %v1271
    %1501 = vmatprep.subr.mxu0 %v1274
    %1502 = vmatpush1.msra.mxu0 %v1273
    %1503 = vmatprep.subr.mxu0 %v1276
    %1504 = vmatpush1.msra.mxu0 %v1275
    %1505 = vmatprep.subr.mxu0 %v1314
    %1506 = vmatpush1.msra.mxu0 %v1313
    %1507 = vmatprep.subr.mxu0 %v1316
    %1508 = vmatpush1.msra.mxu0 %v1315
    %1509 = vmatprep.subr.mxu0 %v1318
    %1510 = vmatpush1.msra.mxu0 %v1317
    %1511 = vmatprep.subr.mxu0 %v1320
    %1512 = vmatpush1.msra.mxu0 %v1319
    %1513 = vmatprep.subr.mxu0 %v1358
    %1514 = vmatpush1.msra.mxu0 %v1357
    %1515 = vmatprep.subr.mxu0 %v1360
    %1516 = vmatpush1.msra.mxu0 %v1359
    %1517 = vmatprep.subr.mxu0 %v1362
    %1518 = vmatpush1.msra.mxu0 %v1361
    %1519 = vmatprep.subr.mxu0 %v1364
    %1520 = vmatpush1.msra.mxu0 %v1363
    %1521 = vmatprep.subr.mxu0 %v1402
    %1522 = vmatpush1.msra.mxu0 %v1401
    %1523 = vmatprep.subr.mxu0 %v1404
    %1524 = vmatpush1.msra.mxu0 %v1403
    %1525 = vmatprep.subr.mxu0 %v1406
    %1526 = vmatpush1.msra.mxu0 %v1405
    %1527 = vmatprep.subr.mxu0 %v1408
    %1528 = vmatpush1.msra.mxu0 %v1407
    %1529 = vmatprep.mubr.f32.mxu0 %v30
    %1530 = vmatmul.mubr.f32.gmra.mrb[0].mxu0 %v29
    %v1531 = vpop.f32.mrb[0].mxu0
    %v1532 = vadd.f32 0.0, %v1531
    %v1533 = vpop.f32.mrb[0].mxu0
    %v1534 = vadd.f32 0.0, %v1533
    %1535 = vmatprep.mubr.f32.mxu0 %v33
    %1536 = vmatmul.mubr.f32.gmra.mrb[0].mxu0 %v32
    %v1537 = vpop.f32.mrb[0].mxu0
    %v1538 = vadd.f32 0.0, %v1537
    %v1539 = vpop.f32.mrb[0].mxu0
    %v1540 = vadd.f32 0.0, %v1539
    %1541 = vdwg.mxu0
    %1542 = vmatprep.subr.mxu0 %v1446
    %1543 = vmatpush1.msra.mxu0 %v1445
    %1544 = vmatprep.subr.mxu0 %v1448
    %1545 = vmatpush1.msra.mxu0 %v1447
    %1546 = vmatprep.subr.mxu0 %v1450
    %1547 = vmatpush1.msra.mxu0 %v1449
    %1548 = vmatprep.subr.mxu0 %v1452
    %1549 = vmatpush1.msra.mxu0 %v1451
    %1550 = vmatprep.subr.mxu0 0.0
    %1551 = vmatpush1.msra.mxu0 0.0
    %1552 = vmatprep.subr.mxu0 0.0
    %1553 = vmatpush1.msra.mxu0 0.0
    %1554 = vmatprep.subr.mxu0 0.0
    %1555 = vmatpush1.msra.mxu0 0.0
    %1556 = vmatprep.subr.mxu0 0.0
    %1557 = vmatpush1.msra.mxu0 0.0
    %1558 = vmatprep.subr.mxu0 0.0
    %1559 = vmatpush1.msra.mxu0 0.0
    %1560 = vmatprep.subr.mxu0 0.0
    %1561 = vmatpush1.msra.mxu0 0.0
    %1562 = vmatprep.subr.mxu0 0.0
    %1563 = vmatpush1.msra.mxu0 0.0
    %1564 = vmatprep.subr.mxu0 0.0
    %1565 = vmatpush1.msra.mxu0 0.0
    %1566 = vmatprep.subr.mxu0 0.0
    %1567 = vmatpush1.msra.mxu0 0.0
    %1568 = vmatprep.subr.mxu0 0.0
    %1569 = vmatpush1.msra.mxu0 0.0
    %1570 = vmatprep.subr.mxu0 0.0
    %1571 = vmatpush1.msra.mxu0 0.0
    %1572 = vmatprep.subr.mxu0 0.0
    %1573 = vmatpush1.msra.mxu0 0.0
    %1574 = vmatprep.subr.mxu0 0.0
    %1575 = vmatpush1.msra.mxu0 0.0
    %1576 = vmatprep.subr.mxu0 0.0
    %1577 = vmatpush1.msra.mxu0 0.0
    %1578 = vmatprep.subr.mxu0 0.0
    %1579 = vmatpush1.msra.mxu0 0.0
    %1580 = vmatprep.subr.mxu0 0.0
    %1581 = vmatpush1.msra.mxu0 0.0
    %1582 = vmatprep.subr.mxu0 0.0
    %1583 = vmatpush1.msra.mxu0 0.0
    %1584 = vmatprep.subr.mxu0 0.0
    %1585 = vmatpush1.msra.mxu0 0.0
    %1586 = vmatprep.subr.mxu0 0.0
    %1587 = vmatpush1.msra.mxu0 0.0
    %1588 = vmatprep.subr.mxu0 0.0
    %1589 = vmatpush1.msra.mxu0 0.0
    %1590 = vmatprep.subr.mxu0 0.0
    %1591 = vmatpush1.msra.mxu0 0.0
    %1592 = vmatprep.subr.mxu0 0.0
    %1593 = vmatpush1.msra.mxu0 0.0
    %1594 = vmatprep.subr.mxu0 0.0
    %1595 = vmatpush1.msra.mxu0 0.0
    %1596 = vmatprep.subr.mxu0 0.0
    %1597 = vmatpush1.msra.mxu0 0.0
    %1598 = vmatprep.subr.mxu0 0.0
    %1599 = vmatpush1.msra.mxu0 0.0
    %1600 = vmatprep.subr.mxu0 0.0
    %1601 = vmatpush1.msra.mxu0 0.0
    %1602 = vmatprep.subr.mxu0 0.0
    %1603 = vmatpush1.msra.mxu0 0.0
    %1604 = vmatprep.subr.mxu0 0.0
    %1605 = vmatpush1.msra.mxu0 0.0
    %1606 = vmatprep.mubr.f32.mxu0 0.0
    %1607 = vmatmul.mubr.f32.gmra.mrb[0].mxu0 %v461
    %v1608 = vpop.f32.mrb[0].mxu0
    %v1609 = vadd.f32 %v1532, %v1608
    %v1610 = vpop.f32.mrb[0].mxu0
    %v1611 = vadd.f32 %v1534, %v1610
    %1612 = vmatprep.mubr.f32.mxu0 0.0
    %1613 = vmatmul.mubr.f32.gmra.mrb[0].mxu0 %v464
    %v1614 = vpop.f32.mrb[0].mxu0
    %v1615 = vadd.f32 %v1538, %v1614
    %v1616 = vpop.f32.mrb[0].mxu0
    %v1617 = vadd.f32 %v1540, %v1616
    %1618 = vdwg.mxu0
    %1619 = vmatprep.subr.mxu0 0.0
    %1620 = vmatpush1.msra.mxu0 %v77
    %1621 = vmatprep.subr.mxu0 0.0
    %1622 = vmatpush1.msra.mxu0 %v80
    %1623 = vmatprep.subr.mxu0 0.0
    %1624 = vmatpush1.msra.mxu0 %v83
    %1625 = vmatprep.subr.mxu0 0.0
    %1626 = vmatpush1.msra.mxu0 %v86
    %1627 = vmatprep.subr.mxu0 0.0
    %1628 = vmatpush1.msra.mxu0 %v1118
    %1629 = vmatprep.subr.mxu0 0.0
    %1630 = vmatpush1.msra.mxu0 %v1124
    %1631 = vmatprep.subr.mxu0 0.0
    %1632 = vmatpush1.msra.mxu0 %v1130
    %1633 = vmatprep.subr.mxu0 0.0
    %1634 = vmatpush1.msra.mxu0 %v1136
    %1635 = vmatprep.subr.mxu0 0.0
    %1636 = vmatpush1.msra.mxu0 %v1162
    %1637 = vmatprep.subr.mxu0 0.0
    %1638 = vmatpush1.msra.mxu0 %v1168
    %1639 = vmatprep.subr.mxu0 0.0
    %1640 = vmatpush1.msra.mxu0 %v1174
    %1641 = vmatprep.subr.mxu0 0.0
    %1642 = vmatpush1.msra.mxu0 %v1180
    %1643 = vmatprep.subr.mxu0 0.0
    %1644 = vmatpush1.msra.mxu0 %v1206
    %1645 = vmatprep.subr.mxu0 0.0
    %1646 = vmatpush1.msra.mxu0 %v1212
    %1647 = vmatprep.subr.mxu0 0.0
    %1648 = vmatpush1.msra.mxu0 %v1218
    %1649 = vmatprep.subr.mxu0 0.0
    %1650 = vmatpush1.msra.mxu0 %v1224
    %1651 = vmatprep.subr.mxu0 0.0
    %1652 = vmatpush1.msra.mxu0 %v1250
    %1653 = vmatprep.subr.mxu0 0.0
    %1654 = vmatpush1.msra.mxu0 %v1256
    %1655 = vmatprep.subr.mxu0 0.0
    %1656 = vmatpush1.msra.mxu0 %v1262
    %1657 = vmatprep.subr.mxu0 0.0
    %1658 = vmatpush1.msra.mxu0 %v1268
    %1659 = vmatprep.subr.mxu0 0.0
    %1660 = vmatpush1.msra.mxu0 %v1294
    %1661 = vmatprep.subr.mxu0 0.0
    %1662 = vmatpush1.msra.mxu0 %v1300
    %1663 = vmatprep.subr.mxu0 0.0
    %1664 = vmatpush1.msra.mxu0 %v1306
    %1665 = vmatprep.subr.mxu0 0.0
    %1666 = vmatpush1.msra.mxu0 %v1312
    %1667 = vmatprep.subr.mxu0 0.0
    %1668 = vmatpush1.msra.mxu0 %v1338
    %1669 = vmatprep.subr.mxu0 0.0
    %1670 = vmatpush1.msra.mxu0 %v1344
    %1671 = vmatprep.subr.mxu0 0.0
    %1672 = vmatpush1.msra.mxu0 %v1350
    %1673 = vmatprep.subr.mxu0 0.0
    %1674 = vmatpush1.msra.mxu0 %v1356
    %1675 = vmatprep.subr.mxu0 0.0
    %1676 = vmatpush1.msra.mxu0 %v1382
    %1677 = vmatprep.subr.mxu0 0.0
    %1678 = vmatpush1.msra.mxu0 %v1388
    %1679 = vmatprep.subr.mxu0 0.0
    %1680 = vmatpush1.msra.mxu0 %v1394
    %1681 = vmatprep.subr.mxu0 0.0
    %1682 = vmatpush1.msra.mxu0 %v1400
    %1683 = vmatprep.mubr.f32.mxu0 %v30
    %1684 = vmatmul.mubr.f32.gmra.mrb[0].mxu0 %v29
    %v1685 = vpop.f32.mrb[0].mxu0
    %v1686 = vadd.f32 0.0, %v1685
    %v1687 = vpop.f32.mrb[0].mxu0
    %1688 = vmatprep.mubr.f32.mxu0 %v33
    %1689 = vmatmul.mubr.f32.gmra.mrb[0].mxu0 %v32
    %v1690 = vpop.f32.mrb[0].mxu0
    %v1691 = vadd.f32 0.0, %v1690
    %v1692 = vpop.f32.mrb[0].mxu0
    %1693 = vdwg.mxu0
    %1694 = vmatprep.subr.mxu0 0.0
    %1695 = vmatpush1.msra.mxu0 %v1426
    %1696 = vmatprep.subr.mxu0 0.0
    %1697 = vmatpush1.msra.mxu0 %v1432
    %1698 = vmatprep.subr.mxu0 0.0
    %1699 = vmatpush1.msra.mxu0 %v1438
    %1700 = vmatprep.subr.mxu0 0.0
    %1701 = vmatpush1.msra.mxu0 %v1444
    %1702 = vmatprep.subr.mxu0 0.0
    %1703 = vmatpush1.msra.mxu0 0.0
    %1704 = vmatprep.subr.mxu0 0.0
    %1705 = vmatpush1.msra.mxu0 0.0
    %1706 = vmatprep.subr.mxu0 0.0
    %1707 = vmatpush1.msra.mxu0 0.0
    %1708 = vmatprep.subr.mxu0 0.0
    %1709 = vmatpush1.msra.mxu0 0.0
    %1710 = vmatprep.subr.mxu0 0.0
    %1711 = vmatpush1.msra.mxu0 0.0
    %1712 = vmatprep.subr.mxu0 0.0
    %1713 = vmatpush1.msra.mxu0 0.0
    %1714 = vmatprep.subr.mxu0 0.0
    %1715 = vmatpush1.msra.mxu0 0.0
    %1716 = vmatprep.subr.mxu0 0.0
    %1717 = vmatpush1.msra.mxu0 0.0
    %1718 = vmatprep.subr.mxu0 0.0
    %1719 = vmatpush1.msra.mxu0 0.0
    %1720 = vmatprep.subr.mxu0 0.0
    %1721 = vmatpush1.msra.mxu0 0.0
    %1722 = vmatprep.subr.mxu0 0.0
    %1723 = vmatpush1.msra.mxu0 0.0
    %1724 = vmatprep.subr.mxu0 0.0
    %1725 = vmatpush1.msra.mxu0 0.0
    %1726 = vmatprep.subr.mxu0 0.0
    %1727 = vmatpush1.msra.mxu0 0.0
    %1728 = vmatprep.subr.mxu0 0.0
    %1729 = vmatpush1.msra.mxu0 0.0
    %1730 = vmatprep.subr.mxu0 0.0
    %1731 = vmatpush1.msra.mxu0 0.0
    %1732 = vmatprep.subr.mxu0 0.0
    %1733 = vmatpush1.msra.mxu0 0.0
    %1734 = vmatprep.subr.mxu0 0.0
    %1735 = vmatpush1.msra.mxu0 0.0
    %1736 = vmatprep.subr.mxu0 0.0
    %1737 = vmatpush1.msra.mxu0 0.0
    %1738 = vmatprep.subr.mxu0 0.0
    %1739 = vmatpush1.msra.mxu0 0.0
    %1740 = vmatprep.subr.mxu0 0.0
    %1741 = vmatpush1.msra.mxu0 0.0
    %1742 = vmatprep.subr.mxu0 0.0
    %1743 = vmatpush1.msra.mxu0 0.0
    %1744 = vmatprep.subr.mxu0 0.0
    %1745 = vmatpush1.msra.mxu0 0.0
    %1746 = vmatprep.subr.mxu0 0.0
    %1747 = vmatpush1.msra.mxu0 0.0
    %1748 = vmatprep.subr.mxu0 0.0
    %1749 = vmatpush1.msra.mxu0 0.0
    %1750 = vmatprep.subr.mxu0 0.0
    %1751 = vmatpush1.msra.mxu0 0.0
    %1752 = vmatprep.subr.mxu0 0.0
    %1753 = vmatpush1.msra.mxu0 0.0
    %1754 = vmatprep.subr.mxu0 0.0
    %1755 = vmatpush1.msra.mxu0 0.0
    %1756 = vmatprep.subr.mxu0 0.0
    %1757 = vmatpush1.msra.mxu0 0.0
    %1758 = vmatprep.mubr.f32.mxu0 0.0
    %1759 = vmatmul.mubr.f32.gmra.mrb[0].mxu0 %v461
    %v1760 = vpop.f32.mrb[0].mxu0
    %v1761 = vadd.f32 %v1686, %v1760
    %v1762 = vpop.f32.mrb[0].mxu0
    %1763 = vmatprep.mubr.f32.mxu0 0.0
    %1764 = vmatmul.mubr.f32.gmra.mrb[0].mxu0 %v464
    %v1765 = vpop.f32.mrb[0].mxu0
    %v1766 = vadd.f32 %v1691, %v1765
    %v1767 = vpop.f32.mrb[0].mxu0
    %1768 = vdwg.mxu0
    %v1769 = vmax.f32 %v1609, 0.0
    %v1770 = vmax.f32 %v1611, 0.0
    %v1771 = vmax.f32 %v1761, 0.0
    %v1772 = vmax.f32 %v1615, 0.0
    %v1773 = vmax.f32 %v1617, 0.0
    %v1774 = vmax.f32 %v1766, 0.0
    %1775 = vmatprep.subr.mxu0 %v1770
    %1776 = vmatpush1.msra.mxu0 %v1769
    %1777 = vmatprep.subr.mxu0 %v1773
    %1778 = vmatpush1.msra.mxu0 %v1772
    %1779 = vmatprep.subr.mxu0 0.0
    %1780 = vmatpush1.msra.mxu0 0.0
    %1781 = vmatprep.subr.mxu0 0.0
    %1782 = vmatpush1.msra.mxu0 0.0
    %1783 = vmatprep.subr.mxu0 0.0
    %1784 = vmatpush1.msra.mxu0 0.0
    %1785 = vmatprep.subr.mxu0 0.0
    %1786 = vmatpush1.msra.mxu0 0.0
    %1787 = vmatprep.subr.mxu0 0.0
    %1788 = vmatpush1.msra.mxu0 0.0
    %1789 = vmatprep.subr.mxu0 0.0
    %1790 = vmatpush1.msra.mxu0 0.0
    %1791 = vmatprep.subr.mxu0 0.0
    %1792 = vmatpush1.msra.mxu0 0.0
    %1793 = vmatprep.subr.mxu0 0.0
    %1794 = vmatpush1.msra.mxu0 0.0
    %1795 = vmatprep.subr.mxu0 0.0
    %1796 = vmatpush1.msra.mxu0 0.0
    %1797 = vmatprep.subr.mxu0 0.0
    %1798 = vmatpush1.msra.mxu0 0.0
    %1799 = vmatprep.subr.mxu0 0.0
    %1800 = vmatpush1.msra.mxu0 0.0
    %1801 = vmatprep.subr.mxu0 0.0
    %1802 = vmatpush1.msra.mxu0 0.0
    %1803 = vmatprep.subr.mxu0 0.0
    %1804 = vmatpush1.msra.mxu0 0.0
    %1805 = vmatprep.subr.mxu0 0.0
    %1806 = vmatpush1.msra.mxu0 0.0
    %1807 = vmatprep.subr.mxu0 0.0
    %1808 = vmatpush1.msra.mxu0 0.0
    %1809 = vmatprep.subr.mxu0 0.0
    %1810 = vmatpush1.msra.mxu0 0.0
    %1811 = vmatprep.subr.mxu0 0.0
    %1812 = vmatpush1.msra.mxu0 0.0
    %1813 = vmatprep.subr.mxu0 0.0
    %1814 = vmatpush1.msra.mxu0 0.0
    %1815 = vmatprep.subr.mxu0 0.0
    %1816 = vmatpush1.msra.mxu0 0.0
    %1817 = vmatprep.subr.mxu0 0.0
    %1818 = vmatpush1.msra.mxu0 0.0
    %1819 = vmatprep.subr.mxu0 0.0
    %1820 = vmatpush1.msra.mxu0 0.0
    %1821 = vmatprep.subr.mxu0 0.0
    %1822 = vmatpush1.msra.mxu0 0.0
    %1823 = vmatprep.subr.mxu0 0.0
    %1824 = vmatpush1.msra.mxu0 0.0
    %1825 = vmatprep.subr.mxu0 0.0
    %1826 = vmatpush1.msra.mxu0 0.0
    %1827 = vmatprep.subr.mxu0 0.0
    %1828 = vmatpush1.msra.mxu0 0.0
    %1829 = vmatprep.subr.mxu0 0.0
    %1830 = vmatpush1.msra.mxu0 0.0
    %1831 = vmatprep.subr.mxu0 0.0
    %1832 = vmatpush1.msra.mxu0 0.0
    %1833 = vmatprep.subr.mxu0 0.0
    %1834 = vmatpush1.msra.mxu0 0.0
    %1835 = vmatprep.subr.mxu0 0.0
    %1836 = vmatpush1.msra.mxu0 0.0
    %1837 = vmatprep.subr.mxu0 0.0
    %1838 = vmatpush1.msra.mxu0 0.0
    %1839 = vmatprep.mubr.f32.mxu0 0.0
    %1840 = vmatmul.mubr.f32.gmra.mrb[0].mxu0 %v778
    %v1841 = vpop.f32.mrb[0].mxu0
    %v1842 = vadd.f32 0.0, %v1841
    %v1843 = vpop.f32.mrb[0].mxu0
    %v1844 = vadd.f32 0.0, %v1843
    %1845 = vmatprep.mubr.f32.mxu0 0.0
    %1846 = vmatmul.mubr.f32.gmra.mrb[0].mxu0 %v781
    %v1847 = vpop.f32.mrb[0].mxu0
    %v1848 = vadd.f32 0.0, %v1847
    %v1849 = vpop.f32.mrb[0].mxu0
    %v1850 = vadd.f32 0.0, %v1849
    %1851 = vmatprep.mubr.f32.mxu0 0.0
    %1852 = vmatmul.mubr.f32.gmra.mrb[0].mxu0 %v784
    %v1853 = vpop.f32.mrb[0].mxu0
    %v1854 = vadd.f32 0.0, %v1853
    %v1855 = vpop.f32.mrb[0].mxu0
    %v1856 = vadd.f32 0.0, %v1855
    %1857 = vmatprep.mubr.f32.mxu0 0.0
    %1858 = vmatmul.mubr.f32.gmra.mrb[0].mxu0 %v787
    %v1859 = vpop.f32.mrb[0].mxu0
    %v1860 = vadd.f32 0.0, %v1859
    %v1861 = vpop.f32.mrb[0].mxu0
    %v1862 = vadd.f32 0.0, %v1861
    %1863 = vdwg.mxu0
    %1864 = vmatprep.subr.mxu0 0.0
    %1865 = vmatpush1.msra.mxu0 %v1771
    %1866 = vmatprep.subr.mxu0 0.0
    %1867 = vmatpush1.msra.mxu0 %v1774
    %1868 = vmatprep.subr.mxu0 0.0
    %1869 = vmatpush1.msra.mxu0 0.0
    %1870 = vmatprep.subr.mxu0 0.0
    %1871 = vmatpush1.msra.mxu0 0.0
    %1872 = vmatprep.subr.mxu0 0.0
    %1873 = vmatpush1.msra.mxu0 0.0
    %1874 = vmatprep.subr.mxu0 0.0
    %1875 = vmatpush1.msra.mxu0 0.0
    %1876 = vmatprep.subr.mxu0 0.0
    %1877 = vmatpush1.msra.mxu0 0.0
    %1878 = vmatprep.subr.mxu0 0.0
    %1879 = vmatpush1.msra.mxu0 0.0
    %1880 = vmatprep.subr.mxu0 0.0
    %1881 = vmatpush1.msra.mxu0 0.0
    %1882 = vmatprep.subr.mxu0 0.0
    %1883 = vmatpush1.msra.mxu0 0.0
    %1884 = vmatprep.subr.mxu0 0.0
    %1885 = vmatpush1.msra.mxu0 0.0
    %1886 = vmatprep.subr.mxu0 0.0
    %1887 = vmatpush1.msra.mxu0 0.0
    %1888 = vmatprep.subr.mxu0 0.0
    %1889 = vmatpush1.msra.mxu0 0.0
    %1890 = vmatprep.subr.mxu0 0.0
    %1891 = vmatpush1.msra.mxu0 0.0
    %1892 = vmatprep.subr.mxu0 0.0
    %1893 = vmatpush1.msra.mxu0 0.0
    %1894 = vmatprep.subr.mxu0 0.0
    %1895 = vmatpush1.msra.mxu0 0.0
    %1896 = vmatprep.subr.mxu0 0.0
    %1897 = vmatpush1.msra.mxu0 0.0
    %1898 = vmatprep.subr.mxu0 0.0
    %1899 = vmatpush1.msra.mxu0 0.0
    %1900 = vmatprep.subr.mxu0 0.0
    %1901 = vmatpush1.msra.mxu0 0.0
    %1902 = vmatprep.subr.mxu0 0.0
    %1903 = vmatpush1.msra.mxu0 0.0
    %1904 = vmatprep.subr.mxu0 0.0
    %1905 = vmatpush1.msra.mxu0 0.0
    %1906 = vmatprep.subr.mxu0 0.0
    %1907 = vmatpush1.msra.mxu0 0.0
    %1908 = vmatprep.subr.mxu0 0.0
    %1909 = vmatpush1.msra.mxu0 0.0
    %1910 = vmatprep.subr.mxu0 0.0
    %1911 = vmatpush1.msra.mxu0 0.0
    %1912 = vmatprep.subr.mxu0 0.0
    %1913 = vmatpush1.msra.mxu0 0.0
    %1914 = vmatprep.subr.mxu0 0.0
    %1915 = vmatpush1.msra.mxu0 0.0
    %1916 = vmatprep.subr.mxu0 0.0
    %1917 = vmatpush1.msra.mxu0 0.0
    %1918 = vmatprep.subr.mxu0 0.0
    %1919 = vmatpush1.msra.mxu0 0.0
    %1920 = vmatprep.subr.mxu0 0.0
    %1921 = vmatpush1.msra.mxu0 0.0
    %1922 = vmatprep.subr.mxu0 0.0
    %1923 = vmatpush1.msra.mxu0 0.0
    %1924 = vmatprep.subr.mxu0 0.0
    %1925 = vmatpush1.msra.mxu0 0.0
    %1926 = vmatprep.subr.mxu0 0.0
    %1927 = vmatpush1.msra.mxu0 0.0
    %1928 = vmatprep.mubr.f32.mxu0 0.0
    %1929 = vmatmul.mubr.f32.gmra.mrb[0].mxu0 %v778
    %v1930 = vpop.f32.mrb[0].mxu0
    %v1931 = vadd.f32 0.0, %v1930
    %v1932 = vpop.f32.mrb[0].mxu0
    %1933 = vmatprep.mubr.f32.mxu0 0.0
    %1934 = vmatmul.mubr.f32.gmra.mrb[0].mxu0 %v781
    %v1935 = vpop.f32.mrb[0].mxu0
    %v1936 = vadd.f32 0.0, %v1935
    %v1937 = vpop.f32.mrb[0].mxu0
    %1938 = vmatprep.mubr.f32.mxu0 0.0
    %1939 = vmatmul.mubr.f32.gmra.mrb[0].mxu0 %v784
    %v1940 = vpop.f32.mrb[0].mxu0
    %v1941 = vadd.f32 0.0, %v1940
    %v1942 = vpop.f32.mrb[0].mxu0
    %1943 = vmatprep.mubr.f32.mxu0 0.0
    %1944 = vmatmul.mubr.f32.gmra.mrb[0].mxu0 %v787
    %v1945 = vpop.f32.mrb[0].mxu0
    %v1946 = vadd.f32 0.0, %v1945
    %v1947 = vpop.f32.mrb[0].mxu0
    %1948 = vdwg.mxu0
    %1961 = vrot.lane.b32.xlu0 %v1842, 19
    %v1962 = vpop.permute.xlu0 %1961
    %1963 = vrot.lane.b32.xlu0 %v1844, 19
    %v1964 = vpop.permute.xlu0 %1963
    %1965 = vrot.lane.b32.xlu0 %v1931, 19
    %v1966 = vpop.permute.xlu0 %1965
    %1967 = vrot.lane.b32.xlu0 %v1848, 19
    %v1968 = vpop.permute.xlu0 %1967
    %1969 = vrot.lane.b32.xlu0 %v1850, 19
    %v1970 = vpop.permute.xlu0 %1969
    %1971 = vrot.lane.b32.xlu0 %v1936, 19
    %v1972 = vpop.permute.xlu0 %1971
    %1973 = vrot.lane.b32.xlu0 %v1854, 19
    %v1974 = vpop.permute.xlu0 %1973
    %1975 = vrot.lane.b32.xlu0 %v1856, 19
    %v1976 = vpop.permute.xlu0 %1975
    %1977 = vrot.lane.b32.xlu0 %v1941, 19
    %v1978 = vpop.permute.xlu0 %1977
    %1979 = vrot.lane.b32.xlu0 %v1860, 19
    %v1980 = vpop.permute.xlu0 %1979
    %1981 = vrot.lane.b32.xlu0 %v1862, 19
    %v1982 = vpop.permute.xlu0 %1981
    %1983 = vrot.lane.b32.xlu0 %v1946, 19
    %v1984 = vpop.permute.xlu0 %1983
    %v1985 = vsel %vm999, %v1962, %v1964
    %v1986 = vsel %vm999, %v1964, %v1966
    %v1987 = vsel %vm999, %v1968, %v1970
    %v1988 = vsel %vm999, %v1970, %v1972
    %v1989 = vsel %vm999, %v1974, %v1976
    %v1990 = vsel %vm999, %v1976, %v1978
    %v1991 = vsel %vm999, %v1980, %v1982
    %v1992 = vsel %vm999, %v1982, %v1984
    %v2005 = vadd.f32 %v51, %v1962
    %v2006 = vadd.f32 %v52, %v1985
    %v2007 = vadd.f32 %v53, %v1986
    %v2008 = vadd.f32 %v54, %v1968
    %v2009 = vadd.f32 %v55, %v1987
    %v2010 = vadd.f32 %v56, %v1988
    %v2011 = vadd.f32 %v57, %v1974
    %v2012 = vadd.f32 %v58, %v1989
    %v2013 = vadd.f32 %v59, %v1990
    %v2014 = vadd.f32 %v60, %v1980
    %v2015 = vadd.f32 %v61, %v1991
    %v2016 = vadd.f32 %v62, %v1992
    %2029 = vrot.lane.b32.xlu0 %v2005, 109
    %v2030 = vpop.permute.xlu0 %2029
    %2031 = vrot.lane.b32.xlu0 %v2006, 109
    %v2032 = vpop.permute.xlu0 %2031
    %2033 = vrot.lane.b32.xlu0 %v2007, 109
    %v2034 = vpop.permute.xlu0 %2033
    %2035 = vrot.lane.b32.xlu0 %v2008, 109
    %v2036 = vpop.permute.xlu0 %2035
    %2037 = vrot.lane.b32.xlu0 %v2009, 109
    %v2038 = vpop.permute.xlu0 %2037
    %2039 = vrot.lane.b32.xlu0 %v2010, 109
    %v2040 = vpop.permute.xlu0 %2039
    %2041 = vrot.lane.b32.xlu0 %v2011, 109
    %v2042 = vpop.permute.xlu0 %2041
    %2043 = vrot.lane.b32.xlu0 %v2012, 109
    %v2044 = vpop.permute.xlu0 %2043
    %2045 = vrot.lane.b32.xlu0 %v2013, 109
    %v2046 = vpop.permute.xlu0 %2045
    %2047 = vrot.lane.b32.xlu0 %v2014, 109
    %v2048 = vpop.permute.xlu0 %2047
    %2049 = vrot.lane.b32.xlu0 %v2015, 109
    %v2050 = vpop.permute.xlu0 %2049
    %2051 = vrot.lane.b32.xlu0 %v2016, 109
    %v2052 = vpop.permute.xlu0 %2051
    %v2053 = vsel %vm258, %v2030, %v2032
    %v2054 = vsel %vm258, %v2032, %v2034
    %v2055 = vsel %vm258, %v2036, %v2038
    %v2056 = vsel %vm258, %v2038, %v2040
    %v2057 = vsel %vm258, %v2042, %v2044
    %v2058 = vsel %vm258, %v2044, %v2046
    %v2059 = vsel %vm258, %v2048, %v2050
    %v2060 = vsel %vm258, %v2050, %v2052
    %s2073 = scalar_lea.vmem [#allocation5], 96
    %2074 = vst [vmem:[%s2073] sm:$0xff] %v2053
    %2075 = vst [vmem:[%s2073 + $0x8] sm:$0xff] %v2054
    %2076 = vst.msk [vmem:[%s2073 + $0x10] sm:$0xff] %vm1090, %v2034
    %2077 = vst [vmem:[%s2073 + $0x18] sm:$0xff] %v2055
    %2078 = vst [vmem:[%s2073 + $0x20] sm:$0xff] %v2056
    %2079 = vst.msk [vmem:[%s2073 + $0x28] sm:$0xff] %vm1090, %v2040
    %2080 = vst [vmem:[%s2073 + $0x30] sm:$0xff] %v2057
    %2081 = vst [vmem:[%s2073 + $0x38] sm:$0xff] %v2058
    %2082 = vst.msk [vmem:[%s2073 + $0x40] sm:$0xff] %vm1090, %v2046
    %2083 = vst [vmem:[%s2073 + $0x48] sm:$0xff] %v2059
    %2084 = vst [vmem:[%s2073 + $0x50] sm:$0xff] %v2060
    %2085 = vst.msk [vmem:[%s2073 + $0x58] sm:$0xff] %vm1090, %v2052
    // Predicated region
    $region18: #{tpu_custom_call.1} parent=1 // pred_check
      _
    $region19: #{tpu_custom_call.1} parent=1 // pred_check_branch
      %2087 = sbr.rel (0) target = $region21
    $region20: #{tpu_custom_call.1} parent=1 // pred_region
      %s2089 = ssub.s32 3072, 3072
      %2090 = vsyncadd [#allocation4], %s2089
      %s2091 = sshll.u32 [#allocation5], 4
      %s2092 = int_to_ptr.vmem [resolvable:$true] %s2091
      %2097 = dma.vmem_to_hbm [thread:$0]  %s2092, 3072, %s3, [#allocation4], 384, 384, 24
    $region21: #{tpu_custom_call.1} parent=1 // pred_fallthru
      _
    // Predicated region
    $region22: #{tpu_custom_call.1} parent=1 // pred_check
      _
    $region23: #{tpu_custom_call.1} parent=1 // pred_check_branch
      %2099 = sbr.rel (0) target = $region25
    $region24: #{tpu_custom_call.1} parent=1 // pred_region
      %2100 = dma.done [#allocation4], 3072
    $region25: #{tpu_custom_call.1} parent=1 // pred_fallthru
      _
    %2101 = vsyncpa [#allocation3], 1
    %2102 = vsyncpa [#allocation4], 1

</llo_original>
